<compile_context>
chip_gen: v7x
topology: tpu7x:2x2x1
jax: 0.10.0
libtpu: 0.0.40
codegen_flags: <defaults>
</compile_context>

<pallas_src>
import functools

import jax
import jax.numpy as jnp
from jax.experimental import pallas as pl
from jax.experimental.pallas import tpu as pltpu

LANE = 128


# --------------------------- generation handling ---------------------------

def _elementwise_dtype():
    # bf16 VALU exists on v6e / v7x; v4 / v5e / v5p keep f32 elementwise.
    try:
        kind = jax.devices()[0].device_kind.lower()
    except Exception:
        return jnp.float32
    return jnp.bfloat16 if ("v6" in kind or "v7" in kind) else jnp.float32


def _vmem_limit_bytes():
    # v7x has 64 MiB physical VMEM per TensorCore; v5e/v6e have 128 MiB.
    cap = None
    try:
        cap = int(pltpu.get_tpu_info().vmem_capacity_bytes)
    except Exception:
        cap = None
    if cap is None:
        try:
            kind = jax.devices()[0].device_kind.lower()
        except Exception:
            kind = ""
        cap = (64 << 20) if "v7" in kind else (128 << 20)
    # Leave headroom for compiler-internal scratch / spills.
    return max(32 << 20, min(cap - (16 << 20), 100 << 20))


def _pick_batch_group(B, C, HWp, budget_bytes):
    # Rough per-lane-column cost: double-buffered bf16 in/out blocks plus
    # ~8-10 live (C, L) f32-equivalent temporaries -> ~44*C + 16 bytes/column.
    per_col = 44 * C + 16
    bb = max(1, min(B, budget_bytes // max(1, per_col * HWp)))
    while B % bb:           # keep the grid exact
        bb -= 1
    return bb


# ----------------------------- kernel helpers ------------------------------

def _mm(a, b):
    # MXU matmul: bf16 operands, f32 accumulation (native on v5e/v6e/v7x).
    return jnp.dot(a.astype(jnp.bfloat16), b.astype(jnp.bfloat16),
                   preferred_element_type=jnp.float32)


def _lrelu(v):
    return jnp.where(v > 0, v, 0.2 * v)


def _layernorm(v, w, b, eps=1e-5):
    # Per-pixel LayerNorm over channels (axis 0 of (C, L)), two-pass to avoid
    # the cancellation risk of E[x^2]-mu^2.  Halo / lane-pad columns come out
    # as the bias value (var ~ 0); they are sliced off on the host.
    mu = jnp.mean(v, axis=0, keepdims=True)
    d = v - mu
    var = jnp.mean(d * d, axis=0, keepdims=True)
    return d * jax.lax.rsqrt(var + eps) * w + b


def _dwconv3x3(xf, wflat, W2):
    # Depthwise 3x3 on the zero-halo layout.  xf: (C, L) where each image is a
    # flattened zero-ringed (H+2, W+2) block padded to a multiple of 128 lanes
    # and the batch is concatenated along lanes.  Every out-of-image tap read
    # lands on a zero, so no boundary masks are needed; all valid-pixel reads
    # stay inside their own image segment, so the block-wide rotation never
    # mixes images.  wflat: (C, 9) row-major taps, same dtype as xf.
    L = xf.shape[-1]
    acc = wflat[:, 4:5] * xf                       # centre tap, no shift
    tap = 0
    for dh in (-1, 0, 1):
        for dw in (-1, 0, 1):
            off = dh * W2 + dw
            if off != 0:
                shifted = pltpu.roll(xf, (-off) % L, axis=1)   # XLU rotate
                acc = acc + wflat[:, tap:tap + 1] * shifted
            tap += 1
    return acc


# -------------------------------- the kernel -------------------------------

def adaptive_filter_kernel(x_ref, nmap_ref,
                           np_dw_ref, fnp_ref, dp_pw_ref, dp_dw_ref,
                           fus_d_ref, ln_w_ref, ln_b_ref,
                           out_ref, *, W2, elem_dtype):
    x = x_ref[...].astype(elem_dtype)              # (C, L)
    nmap = nmap_ref[...].astype(jnp.float32)       # (1, L)

    # noise branch: dwconv3x3 -> LeakyReLU -> (fus_n @ np_pw) 1x1 (folded)
    zn = _lrelu(_dwconv3x3(x, np_dw_ref[...], W2))
    nb = _mm(fnp_ref[...], zn)                     # (C, L) f32

    # detail branch: 1x1 -> LeakyReLU -> dwconv3x3 -> fus_d 1x1
    zd = _lrelu(_mm(dp_pw_ref[...], x).astype(elem_dtype))
    db = _mm(fus_d_ref[...], _dwconv3x3(zd, dp_dw_ref[...], W2))

    # nmap / (1-nmap) commuted to after the fusion matmuls (no concat, no
    # wnoise/wdetail temporaries).
    fused = nmap * nb + (1.0 - nmap) * db
    out = _layernorm(fused, ln_w_ref[...], ln_b_ref[...])
    out_ref[...] = out.astype(out_ref.dtype)


# ------------------------------- host wrapper -------------------------------

def init_params(key, dim):
    keys = jax.random.split(key, 5)
    s = dim ** -0.5

    def nrm(k, shape):
        return jax.random.normal(k, shape, jnp.float32) * s

    fus_w = nrm(keys[4], (dim, 2 * dim))
    return {
        # noise_process: depthwise 3x3 (flattened row-major taps) + 1x1
        "np_dw": nrm(keys[0], (dim, 9)),
        "np_pw": nrm(keys[1], (dim, dim)),
        # detail_preserve: 1x1 + depthwise 3x3
        "dp_pw": nrm(keys[2], (dim, dim)),
        "dp_dw": nrm(keys[3], (dim, 9)),
        # fusion Conv2d(2*dim, dim, 1) split into its two halves
        "fus_n": fus_w[:, :dim],
        "fus_d": fus_w[:, dim:],
        # LayerNorm (assumed per-pixel channel LN)
        "ln_w": jnp.ones((dim, 1), jnp.float32),
        "ln_b": jnp.zeros((dim, 1), jnp.float32),
    }


def adaptive_filter_forward(x, noise_map, params):
    B, C, H, W = x.shape
    H2, W2 = H + 2, W + 2
    HW2 = H2 * W2
    HWp = ((HW2 + LANE - 1) // LANE) * LANE        # lane-dense per-image extent

    elem_dtype = _elementwise_dtype()
    vmem_limit = _vmem_limit_bytes()
    io_dtype = jnp.bfloat16                        # halve HBM DMA bytes

    def to_lane_major(v):
        # (B, c, H, W) -> (c, B*HWp): zero halo ring, flatten, lane-pad,
        # batch folded onto the lane axis.
        c = v.shape[1]
        v = jnp.pad(v, ((0, 0), (0, 0), (1, 1), (1, 1)))       # zero halo
        v = v.reshape(B, c, HW2)
        v = jnp.pad(v, ((0, 0), (0, 0), (0, HWp - HW2)))       # lane padding
        return v.transpose(1, 0, 2).reshape(c, B * HWp).astype(io_dtype)

    xf = to_lane_major(x)                          # (C, B*HWp)
    nf = to_lane_major(noise_map)                  # (1, B*HWp)

    # Host-side fold: fus_n @ (nmap * (np_pw @ z)) == nmap * ((fus_n@np_pw) @ z)
    fnp = params["fus_n"].astype(jnp.float32) @ params["np_pw"].astype(jnp.float32)

    np_dw = params["np_dw"].astype(elem_dtype)
    dp_dw = params["dp_dw"].astype(elem_dtype)
    fnp_b = fnp.astype(jnp.bfloat16)
    dp_pw = params["dp_pw"].astype(jnp.bfloat16)
    fus_d = params["fus_d"].astype(jnp.bfloat16)
    ln_w = params["ln_w"].astype(jnp.float32)
    ln_b = params["ln_b"].astype(jnp.float32)

    Bb = _pick_batch_group(B, C, HWp, vmem_limit // 2)
    G = B // Bb
    L = Bb * HWp                                   # lanes per grid step

    def _rep(shape):
        nd = len(shape)
        return pl.BlockSpec(shape, lambda g, _nd=nd: (0,) * _nd)

    in_specs = [
        pl.BlockSpec((C, L), lambda g: (0, g)),    # x
        pl.BlockSpec((1, L), lambda g: (0, g)),    # noise map
        _rep(np_dw.shape), _rep(fnp_b.shape), _rep(dp_pw.shape),
        _rep(dp_dw.shape), _rep(fus_d.shape), _rep(ln_w.shape), _rep(ln_b.shape),
    ]
    out_specs = pl.BlockSpec((C, L), lambda g: (0, g))

    kernel = functools.partial(adaptive_filter_kernel, W2=W2,
                               elem_dtype=elem_dtype)
    out = pl.pallas_call(
        kernel,
        out_shape=jax.ShapeDtypeStruct((C, B * HWp), io_dtype),
        grid_spec=pltpu.PrefetchScalarGridSpec(
            num_scalar_prefetch=0,
            grid=(G,),
            in_specs=in_specs,
            out_specs=out_specs,
        ),
        compiler_params=pltpu.CompilerParams(
            dimension_semantics=("parallel",),     # batch groups independent
            vmem_limit_bytes=vmem_limit,
        ),
    )(xf, nf, np_dw, fnp_b, dp_pw, dp_dw, fus_d, ln_w, ln_b)

    out = out.reshape(C, B, HWp).transpose(1, 0, 2)[..., :HW2]
    out = out.reshape(B, C, H2, W2)[:, :, 1:-1, 1:-1]
    return out.astype(x.dtype)


# ---------------------------- pure-JAX reference ----------------------------

def adaptive_filter_reference(x, noise_map, params):
    # f32 NCHW reference (lax.conv) used only for the sanity check below.
    def lrelu(v):
        return jnp.where(v > 0, v, 0.2 * v)

    def dw3x3(v, w):
        k = w.reshape(-1, 1, 3, 3)
        return jax.lax.conv_general_dilated(
            v, k, window_strides=(1, 1), padding="SAME",
            feature_group_count=v.shape[1],
            dimension_numbers=("NCHW", "OIHW", "NCHW"))

    def pw(w, v):
        return jnp.einsum("oc,bchw->bohw", w, v)

    nb = pw(params["np_pw"], lrelu(dw3x3(x, params["np_dw"])))
    db = dw3x3(lrelu(pw(params["dp_pw"], x)), params["dp_dw"])
    fused = (pw(params["fus_n"], noise_map * nb)
             + pw(params["fus_d"], (1.0 - noise_map) * db))
    mu = fused.mean(axis=1, keepdims=True)
    d = fused - mu
    var = (d * d).mean(axis=1, keepdims=True)
    out = d * jax.lax.rsqrt(var + 1e-5)
    return (out * params["ln_w"].reshape(1, -1, 1, 1)
            + params["ln_b"].reshape(1, -1, 1, 1))


if __name__ == "__main__":
    dim = 8
    B, H, W = 2, 16, 16

    key = jax.random.PRNGKey(0)
    kx, kn, kp = jax.random.split(key, 3)
    x = jax.random.normal(kx, (B, dim, H, W), jnp.float32)
    noise_map = jax.nn.sigmoid(jax.random.normal(kn, (B, 1, H, W), jnp.float32))
    params = init_params(kp, dim)

    out = adaptive_filter_forward(x, noise_map, params)
    jax.block_until_ready(out)

    assert out.shape == (B, dim, H, W)
    assert bool(jnp.all(jnp.isfinite(out)))

    # Sanity check vs the f32 reference.  Tolerance is loose on purpose: the
    # kernel uses bf16 I/O, bf16 MXU operands and (on v6e/v7x) bf16
    # elementwise math, so expected mean error is ~1e-2; a layout / roll /
    # fold bug would give O(1) errors.
    ref = adaptive_filter_reference(x, noise_map, params)
    mean_err = float(jnp.mean(jnp.abs(out - ref)))
    assert mean_err < 0.1, f"mean abs err {mean_err:.4f}"

    print("KERNEL_OK")
</pallas_src>

<mosaic_0001>
module attributes {stable_mosaic.version = 11 : i64} {
  func.func @adaptive_filter_kernel(%arg0: i32, %arg1: memref<8x768xbf16, #tpu.memory_space<vmem>>, %arg2: memref<1x768xbf16, #tpu.memory_space<vmem>>, %arg3: memref<8x9xf32, #tpu.memory_space<vmem>>, %arg4: memref<8x8xbf16, #tpu.memory_space<vmem>>, %arg5: memref<8x8xbf16, #tpu.memory_space<vmem>>, %arg6: memref<8x9xf32, #tpu.memory_space<vmem>>, %arg7: memref<8x8xbf16, #tpu.memory_space<vmem>>, %arg8: memref<8x1xf32, #tpu.memory_space<vmem>>, %arg9: memref<8x1xf32, #tpu.memory_space<vmem>>, %arg10: memref<8x768xbf16, #tpu.memory_space<vmem>>) attributes {dimension_semantics = [#tpu.dimension_semantics<parallel>], iteration_bounds = array<i64: 1>, scalar_prefetch = 0 : i64, scratch_operands = 0 : i64, tpu.core_type = #tpu.core_type<tc>, window_params = [{transform_indices = @transform_0, window_bounds = array<i64: 8, 768>}, {transform_indices = @transform_1, window_bounds = array<i64: 1, 768>}, {pipeline_mode = #tpu.pipeline_mode<synchronous>, transform_indices = @transform_2, window_bounds = array<i64: 8, 9>}, {pipeline_mode = #tpu.pipeline_mode<synchronous>, transform_indices = @transform_3, window_bounds = array<i64: 8, 8>}, {pipeline_mode = #tpu.pipeline_mode<synchronous>, transform_indices = @transform_4, window_bounds = array<i64: 8, 8>}, {pipeline_mode = #tpu.pipeline_mode<synchronous>, transform_indices = @transform_5, window_bounds = array<i64: 8, 9>}, {pipeline_mode = #tpu.pipeline_mode<synchronous>, transform_indices = @transform_6, window_bounds = array<i64: 8, 8>}, {pipeline_mode = #tpu.pipeline_mode<synchronous>, transform_indices = @transform_7, window_bounds = array<i64: 8, 1>}, {pipeline_mode = #tpu.pipeline_mode<synchronous>, transform_indices = @transform_8, window_bounds = array<i64: 8, 1>}, {transform_indices = @transform_9, window_bounds = array<i64: 8, 768>}]} {
    %c0 = arith.constant 0 : index
    %c0_0 = arith.constant 0 : index
    %0 = vector.load %arg1[%c0, %c0_0] : memref<8x768xbf16, #tpu.memory_space<vmem>>, vector<8x768xbf16>
    %1 = arith.extf %0 : vector<8x768xbf16> to vector<8x768xf32>
    %c0_1 = arith.constant 0 : index
    %c0_2 = arith.constant 0 : index
    %2 = vector.load %arg2[%c0_1, %c0_2] : memref<1x768xbf16, #tpu.memory_space<vmem>>, vector<1x768xbf16>
    %3 = arith.extf %2 : vector<1x768xbf16> to vector<1x768xf32>
    %c0_3 = arith.constant 0 : index
    %c0_4 = arith.constant 0 : index
    %4 = vector.load %arg3[%c0_3, %c0_4] : memref<8x9xf32, #tpu.memory_space<vmem>>, vector<8x9xf32>
    %5 = vector.extract_strided_slice %4 {offsets = [0, 4], sizes = [8, 1], strides = [1, 1]} : vector<8x9xf32> to vector<8x1xf32>
    %6 = vector.broadcast %5 : vector<8x1xf32> to vector<8x768xf32>
    %7 = arith.mulf %6, %1 : vector<8x768xf32>
    %c19_i32 = arith.constant 19 : i32
    %8 = tpu.dynamic_rotate %1 by %c19_i32 dim 1 : vector<8x768xf32>, i32 -> vector<8x768xf32>
    %9 = vector.extract_strided_slice %4 {offsets = [0, 0], sizes = [8, 1], strides = [1, 1]} : vector<8x9xf32> to vector<8x1xf32>
    %10 = vector.broadcast %9 : vector<8x1xf32> to vector<8x768xf32>
    %11 = arith.mulf %10, %8 : vector<8x768xf32>
    %12 = arith.addf %7, %11 : vector<8x768xf32>
    %c18_i32 = arith.constant 18 : i32
    %13 = tpu.dynamic_rotate %1 by %c18_i32 dim 1 : vector<8x768xf32>, i32 -> vector<8x768xf32>
    %14 = vector.extract_strided_slice %4 {offsets = [0, 1], sizes = [8, 1], strides = [1, 1]} : vector<8x9xf32> to vector<8x1xf32>
    %15 = vector.broadcast %14 : vector<8x1xf32> to vector<8x768xf32>
    %16 = arith.mulf %15, %13 : vector<8x768xf32>
    %17 = arith.addf %12, %16 : vector<8x768xf32>
    %c17_i32 = arith.constant 17 : i32
    %18 = tpu.dynamic_rotate %1 by %c17_i32 dim 1 : vector<8x768xf32>, i32 -> vector<8x768xf32>
    %19 = vector.extract_strided_slice %4 {offsets = [0, 2], sizes = [8, 1], strides = [1, 1]} : vector<8x9xf32> to vector<8x1xf32>
    %20 = vector.broadcast %19 : vector<8x1xf32> to vector<8x768xf32>
    %21 = arith.mulf %20, %18 : vector<8x768xf32>
    %22 = arith.addf %17, %21 : vector<8x768xf32>
    %c1_i32 = arith.constant 1 : i32
    %23 = tpu.dynamic_rotate %1 by %c1_i32 dim 1 : vector<8x768xf32>, i32 -> vector<8x768xf32>
    %24 = vector.extract_strided_slice %4 {offsets = [0, 3], sizes = [8, 1], strides = [1, 1]} : vector<8x9xf32> to vector<8x1xf32>
    %25 = vector.broadcast %24 : vector<8x1xf32> to vector<8x768xf32>
    %26 = arith.mulf %25, %23 : vector<8x768xf32>
    %27 = arith.addf %22, %26 : vector<8x768xf32>
    %c767_i32 = arith.constant 767 : i32
    %28 = tpu.dynamic_rotate %1 by %c767_i32 dim 1 : vector<8x768xf32>, i32 -> vector<8x768xf32>
    %29 = vector.extract_strided_slice %4 {offsets = [0, 5], sizes = [8, 1], strides = [1, 1]} : vector<8x9xf32> to vector<8x1xf32>
    %30 = vector.broadcast %29 : vector<8x1xf32> to vector<8x768xf32>
    %31 = arith.mulf %30, %28 : vector<8x768xf32>
    %32 = arith.addf %27, %31 : vector<8x768xf32>
    %c751_i32 = arith.constant 751 : i32
    %33 = tpu.dynamic_rotate %1 by %c751_i32 dim 1 : vector<8x768xf32>, i32 -> vector<8x768xf32>
    %34 = vector.extract_strided_slice %4 {offsets = [0, 6], sizes = [8, 1], strides = [1, 1]} : vector<8x9xf32> to vector<8x1xf32>
    %35 = vector.broadcast %34 : vector<8x1xf32> to vector<8x768xf32>
    %36 = arith.mulf %35, %33 : vector<8x768xf32>
    %37 = arith.addf %32, %36 : vector<8x768xf32>
    %c750_i32 = arith.constant 750 : i32
    %38 = tpu.dynamic_rotate %1 by %c750_i32 dim 1 : vector<8x768xf32>, i32 -> vector<8x768xf32>
    %39 = vector.extract_strided_slice %4 {offsets = [0, 7], sizes = [8, 1], strides = [1, 1]} : vector<8x9xf32> to vector<8x1xf32>
    %40 = vector.broadcast %39 : vector<8x1xf32> to vector<8x768xf32>
    %41 = arith.mulf %40, %38 : vector<8x768xf32>
    %42 = arith.addf %37, %41 : vector<8x768xf32>
    %c749_i32 = arith.constant 749 : i32
    %43 = tpu.dynamic_rotate %1 by %c749_i32 dim 1 : vector<8x768xf32>, i32 -> vector<8x768xf32>
    %44 = vector.extract_strided_slice %4 {offsets = [0, 8], sizes = [8, 1], strides = [1, 1]} : vector<8x9xf32> to vector<8x1xf32>
    %45 = vector.broadcast %44 : vector<8x1xf32> to vector<8x768xf32>
    %46 = arith.mulf %45, %43 : vector<8x768xf32>
    %47 = arith.addf %42, %46 : vector<8x768xf32>
    %cst = arith.constant 0.000000e+00 : f32
    %48 = vector.broadcast %cst : f32 to vector<8x768xf32>
    %49 = arith.cmpf ogt, %47, %48 : vector<8x768xf32>
    %cst_5 = arith.constant 2.000000e-01 : f32
    %50 = vector.broadcast %cst_5 : f32 to vector<8x768xf32>
    %51 = arith.mulf %50, %47 : vector<8x768xf32>
    %52 = arith.select %49, %47, %51 : vector<8x768xi1>, vector<8x768xf32>
    %c0_6 = arith.constant 0 : index
    %c0_7 = arith.constant 0 : index
    %53 = vector.load %arg4[%c0_6, %c0_7] : memref<8x8xbf16, #tpu.memory_space<vmem>>, vector<8x8xbf16>
    %54 = arith.truncf %52 : vector<8x768xf32> to vector<8x768xbf16>
    %cst_8 = arith.constant dense<0.000000e+00> : vector<8x768xf32>
    %55 = tpu.matmul %53, %54, %cst_8 {dimension_numbers = #tpu.dot_dimension_numbers<[1], [0], [0], [1], [0, 0, 1, 1], [], []>} : vector<8x8xbf16>, vector<8x768xbf16>, vector<8x768xf32> -> vector<8x768xf32>
    %c0_9 = arith.constant 0 : index
    %c0_10 = arith.constant 0 : index
    %56 = vector.load %arg5[%c0_9, %c0_10] : memref<8x8xbf16, #tpu.memory_space<vmem>>, vector<8x8xbf16>
    %57 = arith.truncf %1 : vector<8x768xf32> to vector<8x768xbf16>
    %cst_11 = arith.constant dense<0.000000e+00> : vector<8x768xf32>
    %58 = tpu.matmul %56, %57, %cst_11 {dimension_numbers = #tpu.dot_dimension_numbers<[1], [0], [0], [1], [0, 0, 1, 1], [], []>} : vector<8x8xbf16>, vector<8x768xbf16>, vector<8x768xf32> -> vector<8x768xf32>
    %cst_12 = arith.constant 0.000000e+00 : f32
    %59 = vector.broadcast %cst_12 : f32 to vector<8x768xf32>
    %60 = arith.cmpf ogt, %58, %59 : vector<8x768xf32>
    %cst_13 = arith.constant 2.000000e-01 : f32
    %61 = vector.broadcast %cst_13 : f32 to vector<8x768xf32>
    %62 = arith.mulf %61, %58 : vector<8x768xf32>
    %63 = arith.select %60, %58, %62 : vector<8x768xi1>, vector<8x768xf32>
    %c0_14 = arith.constant 0 : index
    %c0_15 = arith.constant 0 : index
    %64 = vector.load %arg7[%c0_14, %c0_15] : memref<8x8xbf16, #tpu.memory_space<vmem>>, vector<8x8xbf16>
    %c0_16 = arith.constant 0 : index
    %c0_17 = arith.constant 0 : index
    %65 = vector.load %arg6[%c0_16, %c0_17] : memref<8x9xf32, #tpu.memory_space<vmem>>, vector<8x9xf32>
    %66 = vector.extract_strided_slice %65 {offsets = [0, 4], sizes = [8, 1], strides = [1, 1]} : vector<8x9xf32> to vector<8x1xf32>
    %67 = vector.broadcast %66 : vector<8x1xf32> to vector<8x768xf32>
    %68 = arith.mulf %67, %63 : vector<8x768xf32>
    %c19_i32_18 = arith.constant 19 : i32
    %69 = tpu.dynamic_rotate %63 by %c19_i32_18 dim 1 : vector<8x768xf32>, i32 -> vector<8x768xf32>
    %70 = vector.extract_strided_slice %65 {offsets = [0, 0], sizes = [8, 1], strides = [1, 1]} : vector<8x9xf32> to vector<8x1xf32>
    %71 = vector.broadcast %70 : vector<8x1xf32> to vector<8x768xf32>
    %72 = arith.mulf %71, %69 : vector<8x768xf32>
    %73 = arith.addf %68, %72 : vector<8x768xf32>
    %c18_i32_19 = arith.constant 18 : i32
    %74 = tpu.dynamic_rotate %63 by %c18_i32_19 dim 1 : vector<8x768xf32>, i32 -> vector<8x768xf32>
    %75 = vector.extract_strided_slice %65 {offsets = [0, 1], sizes = [8, 1], strides = [1, 1]} : vector<8x9xf32> to vector<8x1xf32>
    %76 = vector.broadcast %75 : vector<8x1xf32> to vector<8x768xf32>
    %77 = arith.mulf %76, %74 : vector<8x768xf32>
    %78 = arith.addf %73, %77 : vector<8x768xf32>
    %c17_i32_20 = arith.constant 17 : i32
    %79 = tpu.dynamic_rotate %63 by %c17_i32_20 dim 1 : vector<8x768xf32>, i32 -> vector<8x768xf32>
    %80 = vector.extract_strided_slice %65 {offsets = [0, 2], sizes = [8, 1], strides = [1, 1]} : vector<8x9xf32> to vector<8x1xf32>
    %81 = vector.broadcast %80 : vector<8x1xf32> to vector<8x768xf32>
    %82 = arith.mulf %81, %79 : vector<8x768xf32>
    %83 = arith.addf %78, %82 : vector<8x768xf32>
    %c1_i32_21 = arith.constant 1 : i32
    %84 = tpu.dynamic_rotate %63 by %c1_i32_21 dim 1 : vector<8x768xf32>, i32 -> vector<8x768xf32>
    %85 = vector.extract_strided_slice %65 {offsets = [0, 3], sizes = [8, 1], strides = [1, 1]} : vector<8x9xf32> to vector<8x1xf32>
    %86 = vector.broadcast %85 : vector<8x1xf32> to vector<8x768xf32>
    %87 = arith.mulf %86, %84 : vector<8x768xf32>
    %88 = arith.addf %83, %87 : vector<8x768xf32>
    %c767_i32_22 = arith.constant 767 : i32
    %89 = tpu.dynamic_rotate %63 by %c767_i32_22 dim 1 : vector<8x768xf32>, i32 -> vector<8x768xf32>
    %90 = vector.extract_strided_slice %65 {offsets = [0, 5], sizes = [8, 1], strides = [1, 1]} : vector<8x9xf32> to vector<8x1xf32>
    %91 = vector.broadcast %90 : vector<8x1xf32> to vector<8x768xf32>
    %92 = arith.mulf %91, %89 : vector<8x768xf32>
    %93 = arith.addf %88, %92 : vector<8x768xf32>
    %c751_i32_23 = arith.constant 751 : i32
    %94 = tpu.dynamic_rotate %63 by %c751_i32_23 dim 1 : vector<8x768xf32>, i32 -> vector<8x768xf32>
    %95 = vector.extract_strided_slice %65 {offsets = [0, 6], sizes = [8, 1], strides = [1, 1]} : vector<8x9xf32> to vector<8x1xf32>
    %96 = vector.broadcast %95 : vector<8x1xf32> to vector<8x768xf32>
    %97 = arith.mulf %96, %94 : vector<8x768xf32>
    %98 = arith.addf %93, %97 : vector<8x768xf32>
    %c750_i32_24 = arith.constant 750 : i32
    %99 = tpu.dynamic_rotate %63 by %c750_i32_24 dim 1 : vector<8x768xf32>, i32 -> vector<8x768xf32>
    %100 = vector.extract_strided_slice %65 {offsets = [0, 7], sizes = [8, 1], strides = [1, 1]} : vector<8x9xf32> to vector<8x1xf32>
    %101 = vector.broadcast %100 : vector<8x1xf32> to vector<8x768xf32>
    %102 = arith.mulf %101, %99 : vector<8x768xf32>
    %103 = arith.addf %98, %102 : vector<8x768xf32>
    %c749_i32_25 = arith.constant 749 : i32
    %104 = tpu.dynamic_rotate %63 by %c749_i32_25 dim 1 : vector<8x768xf32>, i32 -> vector<8x768xf32>
    %105 = vector.extract_strided_slice %65 {offsets = [0, 8], sizes = [8, 1], strides = [1, 1]} : vector<8x9xf32> to vector<8x1xf32>
    %106 = vector.broadcast %105 : vector<8x1xf32> to vector<8x768xf32>
    %107 = arith.mulf %106, %104 : vector<8x768xf32>
    %108 = arith.addf %103, %107 : vector<8x768xf32>
    %109 = arith.truncf %108 : vector<8x768xf32> to vector<8x768xbf16>
    %cst_26 = arith.constant dense<0.000000e+00> : vector<8x768xf32>
    %110 = tpu.matmul %64, %109, %cst_26 {dimension_numbers = #tpu.dot_dimension_numbers<[1], [0], [0], [1], [0, 0, 1, 1], [], []>} : vector<8x8xbf16>, vector<8x768xbf16>, vector<8x768xf32> -> vector<8x768xf32>
    %111 = vector.broadcast %3 : vector<1x768xf32> to vector<8x768xf32>
    %112 = arith.mulf %111, %55 : vector<8x768xf32>
    %cst_27 = arith.constant 1.000000e+00 : f32
    %113 = vector.broadcast %cst_27 : f32 to vector<1x768xf32>
    %114 = arith.subf %113, %3 : vector<1x768xf32>
    %115 = vector.broadcast %114 : vector<1x768xf32> to vector<8x768xf32>
    %116 = arith.mulf %115, %110 : vector<8x768xf32>
    %117 = arith.addf %112, %116 : vector<8x768xf32>
    %c0_28 = arith.constant 0 : index
    %c0_29 = arith.constant 0 : index
    %118 = vector.load %arg8[%c0_28, %c0_29] : memref<8x1xf32, #tpu.memory_space<vmem>>, vector<8x1xf32>
    %c0_30 = arith.constant 0 : index
    %c0_31 = arith.constant 0 : index
    %119 = vector.load %arg9[%c0_30, %c0_31] : memref<8x1xf32, #tpu.memory_space<vmem>>, vector<8x1xf32>
    %cst_32 = arith.constant dense<0.000000e+00> : vector<768xf32>
    %120 = vector.multi_reduction <add>, %117, %cst_32 [0] : vector<8x768xf32> to vector<768xf32>
    %121 = vector.shape_cast %120 : vector<768xf32> to vector<1x768xf32>
    %cst_33 = arith.constant 8.000000e+00 : f32
    %122 = vector.broadcast %cst_33 : f32 to vector<1x768xf32>
    %123 = arith.divf %121, %122 : vector<1x768xf32>
    %124 = vector.broadcast %123 : vector<1x768xf32> to vector<8x768xf32>
    %125 = arith.subf %117, %124 : vector<8x768xf32>
    %126 = arith.mulf %125, %125 : vector<8x768xf32>
    %cst_34 = arith.constant dense<0.000000e+00> : vector<768xf32>
    %127 = vector.multi_reduction <add>, %126, %cst_34 [0] : vector<8x768xf32> to vector<768xf32>
    %128 = vector.shape_cast %127 : vector<768xf32> to vector<1x768xf32>
    %cst_35 = arith.constant 8.000000e+00 : f32
    %129 = vector.broadcast %cst_35 : f32 to vector<1x768xf32>
    %130 = arith.divf %128, %129 : vector<1x768xf32>
    %cst_36 = arith.constant 9.99999974E-6 : f32
    %131 = vector.broadcast %cst_36 : f32 to vector<1x768xf32>
    %132 = arith.addf %130, %131 : vector<1x768xf32>
    %133 = math.rsqrt %132 : vector<1x768xf32>
    %134 = vector.broadcast %133 : vector<1x768xf32> to vector<8x768xf32>
    %135 = arith.mulf %125, %134 : vector<8x768xf32>
    %136 = vector.broadcast %118 : vector<8x1xf32> to vector<8x768xf32>
    %137 = arith.mulf %135, %136 : vector<8x768xf32>
    %138 = vector.broadcast %119 : vector<8x1xf32> to vector<8x768xf32>
    %139 = arith.addf %137, %138 : vector<8x768xf32>
    %140 = arith.truncf %139 : vector<8x768xf32> to vector<8x768xbf16>
    %c0_37 = arith.constant 0 : index
    %c0_38 = arith.constant 0 : index
    %141 = vector.load %arg10[%c0_37, %c0_38] : memref<8x768xbf16, #tpu.memory_space<vmem>>, vector<8x768xbf16>
    tpu.vector_store %arg10[%c0_37, %c0_38], %140 {strides = array<i32>} : memref<8x768xbf16, #tpu.memory_space<vmem>>, vector<8x768xbf16>,
    return
  }
  func.func @transform_0(%arg0: i32) -> (i32, i32) {
    %c0_i32 = arith.constant 0 : i32
    %c0_i32_0 = arith.constant 0 : i32
    return %c0_i32, %arg0 : i32, i32
  }
  func.func @transform_1(%arg0: i32) -> (i32, i32) {
    %c0_i32 = arith.constant 0 : i32
    %c0_i32_0 = arith.constant 0 : i32
    return %c0_i32, %arg0 : i32, i32
  }
  func.func @transform_2(%arg0: i32) -> (i32, i32) {
    %c0_i32 = arith.constant 0 : i32
    %c0_i32_0 = arith.constant 0 : i32
    %c0_i32_1 = arith.constant 0 : i32
    return %c0_i32, %c0_i32_0 : i32, i32
  }
  func.func @transform_3(%arg0: i32) -> (i32, i32) {
    %c0_i32 = arith.constant 0 : i32
    %c0_i32_0 = arith.constant 0 : i32
    %c0_i32_1 = arith.constant 0 : i32
    return %c0_i32, %c0_i32_0 : i32, i32
  }
  func.func @transform_4(%arg0: i32) -> (i32, i32) {
    %c0_i32 = arith.constant 0 : i32
    %c0_i32_0 = arith.constant 0 : i32
    %c0_i32_1 = arith.constant 0 : i32
    return %c0_i32, %c0_i32_0 : i32, i32
  }
  func.func @transform_5(%arg0: i32) -> (i32, i32) {
    %c0_i32 = arith.constant 0 : i32
    %c0_i32_0 = arith.constant 0 : i32
    %c0_i32_1 = arith.constant 0 : i32
    return %c0_i32, %c0_i32_0 : i32, i32
  }
  func.func @transform_6(%arg0: i32) -> (i32, i32) {
    %c0_i32 = arith.constant 0 : i32
    %c0_i32_0 = arith.constant 0 : i32
    %c0_i32_1 = arith.constant 0 : i32
    return %c0_i32, %c0_i32_0 : i32, i32
  }
  func.func @transform_7(%arg0: i32) -> (i32, i32) {
    %c0_i32 = arith.constant 0 : i32
    %c0_i32_0 = arith.constant 0 : i32
    %c0_i32_1 = arith.constant 0 : i32
    return %c0_i32, %c0_i32_0 : i32, i32
  }
  func.func @transform_8(%arg0: i32) -> (i32, i32) {
    %c0_i32 = arith.constant 0 : i32
    %c0_i32_0 = arith.constant 0 : i32
    %c0_i32_1 = arith.constant 0 : i32
    return %c0_i32, %c0_i32_0 : i32, i32
  }
  func.func @transform_9(%arg0: i32) -> (i32, i32) {
    %c0_i32 = arith.constant 0 : i32
    %c0_i32_0 = arith.constant 0 : i32
    return %c0_i32, %arg0 : i32, i32
  }
}

</mosaic_0001>

<llo_original>
// kernel: tpu_custom_call.1
$region0: #{tpu_custom_call.1}
  #allocation0 [shape = 'u32[]', space=smem, size = 0x4, offset = 0x4, fixed_abs, tag = 'smem constant byte address 0x4 - core index']
  #allocation1 [shape = 'u32[144,128]{1,0:T(1,128)}', space=vmem, size = 0x12000, scoped, tag = 'internal scratch']
  %s0 = inlined_call_operand.hbm [shape: bf16[8,768], index: 0, kind: input, shape index: {}]
  %s1 = inlined_call_operand.hbm [shape: bf16[1,768], index: 1, kind: input, shape index: {}]
  %s2 = inlined_call_operand.hbm [shape: f32[8,9], index: 2, kind: input, shape index: {}]
  %s3 = inlined_call_operand.hbm [shape: bf16[8,8], index: 3, kind: input, shape index: {}]
  %s4 = inlined_call_operand.hbm [shape: bf16[8,8], index: 4, kind: input, shape index: {}]
  %s5 = inlined_call_operand.hbm [shape: f32[8,9], index: 5, kind: input, shape index: {}]
  %s6 = inlined_call_operand.hbm [shape: bf16[8,8], index: 6, kind: input, shape index: {}]
  %s7 = inlined_call_operand.hbm [shape: f32[8,1], index: 7, kind: input, shape index: {}]
  %s8 = inlined_call_operand.hbm [shape: f32[8,1], index: 8, kind: input, shape index: {}]
  %s9 = inlined_call_operand.hbm [shape: bf16[8,768], index: 9, kind: output, shape index: {}]
  %s10 = sld [smem:[#allocation0]]
  $region82: #{tpu_custom_call.1} parent=0
    _
  %s12 = ssub.s32 1, %s10
  %s13 = scalar_select 0, %s12, %s10
  $region1: #{tpu_custom_call.1} parent=0
    #allocation2 [shape = 'u8[12288]{0}', space=vmem, size = 0x3000, scoped, tag = 'input window, operand 0, single buffered']
    #allocation3 [shape = 's32[1]{0}', space=sflag, size = 0x4, scoped, tag = 'scoped memory for tpu_custom_call.1']
    #allocation4 [shape = 's32[1]{0}', space=sflag, size = 0x4, scoped, tag = 'scoped memory for tpu_custom_call.1']
    #allocation5 [shape = 'u8[3072]{0}', space=vmem, size = 0xc00, scoped, tag = 'input window, operand 1, single buffered']
    #allocation6 [shape = 's32[1]{0}', space=sflag, size = 0x4, scoped, tag = 'scoped memory for tpu_custom_call.1']
    #allocation7 [shape = 'u8[4096]{0}', space=vmem, size = 0x1000, scoped, tag = 'input window, operand 2, single buffered']
    #allocation8 [shape = 'u8[2048]{0}', space=vmem, size = 0x800, scoped, tag = 'input window, operand 3, single buffered']
    #allocation9 [shape = 's32[1]{0}', space=sflag, size = 0x4, scoped, tag = 'scoped memory for tpu_custom_call.1']
    #allocation10 [shape = 'u8[2048]{0}', space=vmem, size = 0x800, scoped, tag = 'input window, operand 4, single buffered']
    #allocation11 [shape = 'u8[4096]{0}', space=vmem, size = 0x1000, scoped, tag = 'input window, operand 5, single buffered']
    #allocation12 [shape = 's32[1]{0}', space=sflag, size = 0x4, scoped, tag = 'scoped memory for tpu_custom_call.1']
    #allocation13 [shape = 'u8[2048]{0}', space=vmem, size = 0x800, scoped, tag = 'input window, operand 6, single buffered']
    #allocation14 [shape = 'u8[4096]{0}', space=vmem, size = 0x1000, scoped, tag = 'input window, operand 7, single buffered']
    #allocation15 [shape = 's32[1]{0}', space=sflag, size = 0x4, scoped, tag = 'scoped memory for tpu_custom_call.1']
    #allocation16 [shape = 'u8[4096]{0}', space=vmem, size = 0x1000, scoped, tag = 'input window, operand 8, single buffered']
    #allocation17 [shape = 'u8[12288]{0}', space=vmem, size = 0x3000, scoped, tag = 'output window, operand 0, single buffered']
    %14 = vsyncpa [#allocation3], 0
    %15 = vsyncpa [#allocation6], 0
    %16 = vsyncpa [#allocation9], 0
    %17 = vsyncpa [#allocation12], 0
    %18 = vsyncpa [#allocation15], 0
    %19 = vsyncpa [#allocation4], 0
    // Predicated region
    $region2: #{tpu_custom_call.1} parent=1 // pred_check
      _
    $region3: #{tpu_custom_call.1} parent=1 // pred_check_branch
      %21 = sbr.rel (0) target = $region5
    $region4: #{tpu_custom_call.1} parent=1 // pred_region
      %s23 = ssub.s32 384, 384
      %24 = vsyncadd [#allocation3], %s23
      %s26 = sshll.u32 [#allocation2], 4
      %s27 = int_to_ptr.vmem [resolvable:$true] %s26
      %29 = dma.hbm_to_vmem [thread:$0]  %s0, 384, %s27, [#allocation3]
    $region5: #{tpu_custom_call.1} parent=1 // pred_fallthru
      _
    // Predicated region
    $region6: #{tpu_custom_call.1} parent=1 // pred_check
      _
    $region7: #{tpu_custom_call.1} parent=1 // pred_check_branch
      %31 = sbr.rel (0) target = $region9
    $region8: #{tpu_custom_call.1} parent=1 // pred_region
      %s33 = ssub.s32 96, 96
      %34 = vsyncadd [#allocation6], %s33
      %s36 = sshll.u32 [#allocation5], 4
      %s37 = int_to_ptr.vmem [resolvable:$true] %s36
      %39 = dma.hbm_to_vmem [thread:$0]  %s1, 96, %s37, [#allocation6]
    $region9: #{tpu_custom_call.1} parent=1 // pred_fallthru
      _
    // Predicated region
    $region10: #{tpu_custom_call.1} parent=1 // pred_check
      _
    $region11: #{tpu_custom_call.1} parent=1 // pred_check_branch
      %41 = sbr.rel (0) target = $region13
    $region12: #{tpu_custom_call.1} parent=1 // pred_region
      %s43 = ssub.s32 128, 128
      %44 = vsyncadd [#allocation6], %s43
      %s46 = sshll.u32 [#allocation7], 4
      %s47 = int_to_ptr.vmem [resolvable:$true] %s46
      %49 = dma.hbm_to_vmem [thread:$0]  %s2, 128, %s47, [#allocation6]
    $region13: #{tpu_custom_call.1} parent=1 // pred_fallthru
      _
    // Predicated region
    $region14: #{tpu_custom_call.1} parent=1 // pred_check
      _
    $region15: #{tpu_custom_call.1} parent=1 // pred_check_branch
      %51 = sbr.rel (0) target = $region17
    $region16: #{tpu_custom_call.1} parent=1 // pred_region
      %s53 = ssub.s32 64, 64
      %54 = vsyncadd [#allocation9], %s53
      %s56 = sshll.u32 [#allocation8], 4
      %s57 = int_to_ptr.vmem [resolvable:$true] %s56
      %59 = dma.hbm_to_vmem [thread:$0]  %s3, 64, %s57, [#allocation9]
    $region17: #{tpu_custom_call.1} parent=1 // pred_fallthru
      _
    // Predicated region
    $region18: #{tpu_custom_call.1} parent=1 // pred_check
      _
    $region19: #{tpu_custom_call.1} parent=1 // pred_check_branch
      %61 = sbr.rel (0) target = $region21
    $region20: #{tpu_custom_call.1} parent=1 // pred_region
      %s63 = ssub.s32 64, 64
      %64 = vsyncadd [#allocation9], %s63
      %s66 = sshll.u32 [#allocation10], 4
      %s67 = int_to_ptr.vmem [resolvable:$true] %s66
      %69 = dma.hbm_to_vmem [thread:$0]  %s4, 64, %s67, [#allocation9]
    $region21: #{tpu_custom_call.1} parent=1 // pred_fallthru
      _
    // Predicated region
    $region22: #{tpu_custom_call.1} parent=1 // pred_check
      _
    $region23: #{tpu_custom_call.1} parent=1 // pred_check_branch
      %71 = sbr.rel (0) target = $region25
    $region24: #{tpu_custom_call.1} parent=1 // pred_region
      %s73 = ssub.s32 128, 128
      %74 = vsyncadd [#allocation12], %s73
      %s76 = sshll.u32 [#allocation11], 4
      %s77 = int_to_ptr.vmem [resolvable:$true] %s76
      %79 = dma.hbm_to_vmem [thread:$0]  %s5, 128, %s77, [#allocation12]
    $region25: #{tpu_custom_call.1} parent=1 // pred_fallthru
      _
    // Predicated region
    $region26: #{tpu_custom_call.1} parent=1 // pred_check
      _
    $region27: #{tpu_custom_call.1} parent=1 // pred_check_branch
      %81 = sbr.rel (0) target = $region29
    $region28: #{tpu_custom_call.1} parent=1 // pred_region
      %s83 = ssub.s32 64, 64
      %84 = vsyncadd [#allocation12], %s83
      %s86 = sshll.u32 [#allocation13], 4
      %s87 = int_to_ptr.vmem [resolvable:$true] %s86
      %89 = dma.hbm_to_vmem [thread:$0]  %s6, 64, %s87, [#allocation12]
    $region29: #{tpu_custom_call.1} parent=1 // pred_fallthru
      _
    // Predicated region
    $region30: #{tpu_custom_call.1} parent=1 // pred_check
      _
    $region31: #{tpu_custom_call.1} parent=1 // pred_check_branch
      %91 = sbr.rel (0) target = $region33
    $region32: #{tpu_custom_call.1} parent=1 // pred_region
      %s93 = ssub.s32 128, 128
      %94 = vsyncadd [#allocation15], %s93
      %s96 = sshll.u32 [#allocation14], 4
      %s97 = int_to_ptr.vmem [resolvable:$true] %s96
      %99 = dma.hbm_to_vmem [thread:$0]  %s7, 128, %s97, [#allocation15]
    $region33: #{tpu_custom_call.1} parent=1 // pred_fallthru
      _
    // Predicated region
    $region34: #{tpu_custom_call.1} parent=1 // pred_check
      _
    $region35: #{tpu_custom_call.1} parent=1 // pred_check_branch
      %101 = sbr.rel (0) target = $region37
    $region36: #{tpu_custom_call.1} parent=1 // pred_region
      %s103 = ssub.s32 128, 128
      %104 = vsyncadd [#allocation15], %s103
      %s106 = sshll.u32 [#allocation16], 4
      %s107 = int_to_ptr.vmem [resolvable:$true] %s106
      %109 = dma.hbm_to_vmem [thread:$0]  %s8, 128, %s107, [#allocation15]
    $region37: #{tpu_custom_call.1} parent=1 // pred_fallthru
      _
    // Predicated region
    $region38: #{tpu_custom_call.1} parent=1 // pred_check
      _
    $region39: #{tpu_custom_call.1} parent=1 // pred_check_branch
      %111 = sbr.rel (0) target = $region41
    $region40: #{tpu_custom_call.1} parent=1 // pred_region
      %112 = dma.done [#allocation3], 384
    $region41: #{tpu_custom_call.1} parent=1 // pred_fallthru
      _
    // Predicated region
    $region42: #{tpu_custom_call.1} parent=1 // pred_check
      _
    $region43: #{tpu_custom_call.1} parent=1 // pred_check_branch
      %114 = sbr.rel (0) target = $region45
    $region44: #{tpu_custom_call.1} parent=1 // pred_region
      %115 = dma.done [#allocation6], 96
    $region45: #{tpu_custom_call.1} parent=1 // pred_fallthru
      _
    // Predicated region
    $region46: #{tpu_custom_call.1} parent=1 // pred_check
      _
    $region47: #{tpu_custom_call.1} parent=1 // pred_check_branch
      %117 = sbr.rel (0) target = $region49
    $region48: #{tpu_custom_call.1} parent=1 // pred_region
      %118 = dma.done [#allocation6], 128
    $region49: #{tpu_custom_call.1} parent=1 // pred_fallthru
      _
    // Predicated region
    $region50: #{tpu_custom_call.1} parent=1 // pred_check
      _
    $region51: #{tpu_custom_call.1} parent=1 // pred_check_branch
      %120 = sbr.rel (0) target = $region53
    $region52: #{tpu_custom_call.1} parent=1 // pred_region
      %121 = dma.done [#allocation9], 64
    $region53: #{tpu_custom_call.1} parent=1 // pred_fallthru
      _
    // Predicated region
    $region54: #{tpu_custom_call.1} parent=1 // pred_check
      _
    $region55: #{tpu_custom_call.1} parent=1 // pred_check_branch
      %123 = sbr.rel (0) target = $region57
    $region56: #{tpu_custom_call.1} parent=1 // pred_region
      %124 = dma.done [#allocation9], 64
    $region57: #{tpu_custom_call.1} parent=1 // pred_fallthru
      _
    // Predicated region
    $region58: #{tpu_custom_call.1} parent=1 // pred_check
      _
    $region59: #{tpu_custom_call.1} parent=1 // pred_check_branch
      %126 = sbr.rel (0) target = $region61
    $region60: #{tpu_custom_call.1} parent=1 // pred_region
      %127 = dma.done [#allocation12], 128
    $region61: #{tpu_custom_call.1} parent=1 // pred_fallthru
      _
    // Predicated region
    $region62: #{tpu_custom_call.1} parent=1 // pred_check
      _
    $region63: #{tpu_custom_call.1} parent=1 // pred_check_branch
      %129 = sbr.rel (0) target = $region65
    $region64: #{tpu_custom_call.1} parent=1 // pred_region
      %130 = dma.done [#allocation12], 64
    $region65: #{tpu_custom_call.1} parent=1 // pred_fallthru
      _
    // Predicated region
    $region66: #{tpu_custom_call.1} parent=1 // pred_check
      _
    $region67: #{tpu_custom_call.1} parent=1 // pred_check_branch
      %132 = sbr.rel (0) target = $region69
    $region68: #{tpu_custom_call.1} parent=1 // pred_region
      %133 = dma.done [#allocation15], 128
    $region69: #{tpu_custom_call.1} parent=1 // pred_fallthru
      _
    // Predicated region
    $region70: #{tpu_custom_call.1} parent=1 // pred_check
      _
    $region71: #{tpu_custom_call.1} parent=1 // pred_check_branch
      %135 = sbr.rel (0) target = $region73
    $region72: #{tpu_custom_call.1} parent=1 // pred_region
      %136 = dma.done [#allocation15], 128
    $region73: #{tpu_custom_call.1} parent=1 // pred_fallthru
      _
    %v138 = vld [vmem:[#allocation2] sm:$0xff]
    %v139 = vld [vmem:[#allocation2 + $0x8] sm:$0xff]
    %v140 = vld [vmem:[#allocation2 + $0x10] sm:$0xff]
    %v141 = vunpack.c.l.bf16 %v138
    %v142 = vunpack.c.h.bf16 %v138
    %v143 = vunpack.c.l.bf16 %v139
    %v144 = vunpack.c.h.bf16 %v139
    %v145 = vunpack.c.l.bf16 %v140
    %v146 = vunpack.c.h.bf16 %v140
    %v147 = vld [vmem:[#allocation5] sm:$0x3f]
    %v148 = vunpack.c.l.bf16 %v147
    %v149 = vunpack.c.h.bf16 %v147
    %v150 = vld [vmem:[#allocation7] sm:$0xff]
    %152 = vset.pattern.permute.xlu0 4
    %153 = vperm.xlu0 %152, %v150
    %v154 = vpop.permute.xlu0 %153
    %v156 = vmul.f32 %v154, %v141
    %v157 = vmul.f32 %v154, %v142
    %v158 = vmul.f32 %v154, %v143
    %v159 = vmul.f32 %v154, %v144
    %v160 = vmul.f32 %v154, %v145
    %v161 = vmul.f32 %v154, %v146
    %162 = vrot.lane.b32.xlu0 %v141, 19
    %v163 = vpop.permute.xlu0 %162
    %164 = vrot.lane.b32.xlu0 %v142, 19
    %v165 = vpop.permute.xlu0 %164
    %166 = vrot.lane.b32.xlu0 %v143, 19
    %v167 = vpop.permute.xlu0 %166
    %168 = vrot.lane.b32.xlu0 %v144, 19
    %v169 = vpop.permute.xlu0 %168
    %170 = vrot.lane.b32.xlu0 %v145, 19
    %v171 = vpop.permute.xlu0 %170
    %172 = vrot.lane.b32.xlu0 %v146, 19
    %v173 = vpop.permute.xlu0 %172
    %v174 = vlaneseq
    %v175 = vand.u32 %v174, 127
    %vm176 = vcmp.lt.s32.totalorder %v175, 19
    %v177 = vsel %vm176, %v171, %v173
    %v178 = vsel %vm176, %v169, %v171
    %v179 = vsel %vm176, %v167, %v169
    %v180 = vsel %vm176, %v165, %v167
    %v181 = vsel %vm176, %v163, %v165
    %v182 = vsel %vm176, %v173, %v163
    %183 = vset.pattern.permute.xlu0 0
    %184 = vperm.xlu0 %183, %v150
    %v185 = vpop.permute.xlu0 %184
    %v187 = vmul.f32 %v185, %v182
    %v188 = vmul.f32 %v185, %v181
    %v189 = vmul.f32 %v185, %v180
    %v190 = vmul.f32 %v185, %v179
    %v191 = vmul.f32 %v185, %v178
    %v192 = vmul.f32 %v185, %v177
    %v193 = vadd.f32 %v156, %v187
    %v194 = vadd.f32 %v157, %v188
    %v195 = vadd.f32 %v158, %v189
    %v196 = vadd.f32 %v159, %v190
    %v197 = vadd.f32 %v160, %v191
    %v198 = vadd.f32 %v161, %v192
    %199 = vrot.lane.b32.xlu0 %v141, 18
    %v200 = vpop.permute.xlu0 %199
    %201 = vrot.lane.b32.xlu0 %v142, 18
    %v202 = vpop.permute.xlu0 %201
    %203 = vrot.lane.b32.xlu0 %v143, 18
    %v204 = vpop.permute.xlu0 %203
    %205 = vrot.lane.b32.xlu0 %v144, 18
    %v206 = vpop.permute.xlu0 %205
    %207 = vrot.lane.b32.xlu0 %v145, 18
    %v208 = vpop.permute.xlu0 %207
    %209 = vrot.lane.b32.xlu0 %v146, 18
    %v210 = vpop.permute.xlu0 %209
    %vm211 = vcmp.lt.s32.totalorder %v175, 18
    %v212 = vsel %vm211, %v208, %v210
    %v213 = vsel %vm211, %v206, %v208
    %v214 = vsel %vm211, %v204, %v206
    %v215 = vsel %vm211, %v202, %v204
    %v216 = vsel %vm211, %v200, %v202
    %v217 = vsel %vm211, %v210, %v200
    %218 = vset.pattern.permute.xlu0 1
    %219 = vperm.xlu0 %218, %v150
    %v220 = vpop.permute.xlu0 %219
    %v222 = vmul.f32 %v220, %v217
    %v223 = vmul.f32 %v220, %v216
    %v224 = vmul.f32 %v220, %v215
    %v225 = vmul.f32 %v220, %v214
    %v226 = vmul.f32 %v220, %v213
    %v227 = vmul.f32 %v220, %v212
    %v228 = vadd.f32 %v193, %v222
    %v229 = vadd.f32 %v194, %v223
    %v230 = vadd.f32 %v195, %v224
    %v231 = vadd.f32 %v196, %v225
    %v232 = vadd.f32 %v197, %v226
    %v233 = vadd.f32 %v198, %v227
    %234 = vrot.lane.b32.xlu0 %v141, 17
    %v235 = vpop.permute.xlu0 %234
    %236 = vrot.lane.b32.xlu0 %v142, 17
    %v237 = vpop.permute.xlu0 %236
    %238 = vrot.lane.b32.xlu0 %v143, 17
    %v239 = vpop.permute.xlu0 %238
    %240 = vrot.lane.b32.xlu0 %v144, 17
    %v241 = vpop.permute.xlu0 %240
    %242 = vrot.lane.b32.xlu0 %v145, 17
    %v243 = vpop.permute.xlu0 %242
    %244 = vrot.lane.b32.xlu0 %v146, 17
    %v245 = vpop.permute.xlu0 %244
    %vm246 = vcmp.lt.s32.totalorder %v175, 17
    %v247 = vsel %vm246, %v243, %v245
    %v248 = vsel %vm246, %v241, %v243
    %v249 = vsel %vm246, %v239, %v241
    %v250 = vsel %vm246, %v237, %v239
    %v251 = vsel %vm246, %v235, %v237
    %v252 = vsel %vm246, %v245, %v235
    %253 = vset.pattern.permute.xlu0 2
    %254 = vperm.xlu0 %253, %v150
    %v255 = vpop.permute.xlu0 %254
    %v257 = vmul.f32 %v255, %v252
    %v258 = vmul.f32 %v255, %v251
    %v259 = vmul.f32 %v255, %v250
    %v260 = vmul.f32 %v255, %v249
    %v261 = vmul.f32 %v255, %v248
    %v262 = vmul.f32 %v255, %v247
    %v263 = vadd.f32 %v228, %v257
    %v264 = vadd.f32 %v229, %v258
    %v265 = vadd.f32 %v230, %v259
    %v266 = vadd.f32 %v231, %v260
    %v267 = vadd.f32 %v232, %v261
    %v268 = vadd.f32 %v233, %v262
    %269 = vrot.lane.b32.xlu0 %v141, 1
    %v270 = vpop.permute.xlu0 %269
    %271 = vrot.lane.b32.xlu0 %v142, 1
    %v272 = vpop.permute.xlu0 %271
    %273 = vrot.lane.b32.xlu0 %v143, 1
    %v274 = vpop.permute.xlu0 %273
    %275 = vrot.lane.b32.xlu0 %v144, 1
    %v276 = vpop.permute.xlu0 %275
    %277 = vrot.lane.b32.xlu0 %v145, 1
    %v278 = vpop.permute.xlu0 %277
    %279 = vrot.lane.b32.xlu0 %v146, 1
    %v280 = vpop.permute.xlu0 %279
    %vm281 = vcmp.lt.s32.totalorder %v175, 1
    %v282 = vsel %vm281, %v278, %v280
    %v283 = vsel %vm281, %v276, %v278
    %v284 = vsel %vm281, %v274, %v276
    %v285 = vsel %vm281, %v272, %v274
    %v286 = vsel %vm281, %v270, %v272
    %v287 = vsel %vm281, %v280, %v270
    %288 = vset.pattern.permute.xlu0 3
    %289 = vperm.xlu0 %288, %v150
    %v290 = vpop.permute.xlu0 %289
    %v292 = vmul.f32 %v290, %v287
    %v293 = vmul.f32 %v290, %v286
    %v294 = vmul.f32 %v290, %v285
    %v295 = vmul.f32 %v290, %v284
    %v296 = vmul.f32 %v290, %v283
    %v297 = vmul.f32 %v290, %v282
    %v298 = vadd.f32 %v263, %v292
    %v299 = vadd.f32 %v264, %v293
    %v300 = vadd.f32 %v265, %v294
    %v301 = vadd.f32 %v266, %v295
    %v302 = vadd.f32 %v267, %v296
    %v303 = vadd.f32 %v268, %v297
    %304 = vrot.lane.b32.xlu0 %v141, 127
    %v305 = vpop.permute.xlu0 %304
    %306 = vrot.lane.b32.xlu0 %v142, 127
    %v307 = vpop.permute.xlu0 %306
    %308 = vrot.lane.b32.xlu0 %v143, 127
    %v309 = vpop.permute.xlu0 %308
    %310 = vrot.lane.b32.xlu0 %v144, 127
    %v311 = vpop.permute.xlu0 %310
    %312 = vrot.lane.b32.xlu0 %v145, 127
    %v313 = vpop.permute.xlu0 %312
    %314 = vrot.lane.b32.xlu0 %v146, 127
    %v315 = vpop.permute.xlu0 %314
    %vm316 = vcmp.lt.s32.totalorder %v175, 127
    %v317 = vsel %vm316, %v313, %v315
    %v318 = vsel %vm316, %v311, %v313
    %v319 = vsel %vm316, %v309, %v311
    %v320 = vsel %vm316, %v307, %v309
    %v321 = vsel %vm316, %v305, %v307
    %v322 = vsel %vm316, %v315, %v305
    %323 = vset.pattern.permute.xlu0 5
    %324 = vperm.xlu0 %323, %v150
    %v325 = vpop.permute.xlu0 %324
    %v327 = vmul.f32 %v325, %v321
    %v328 = vmul.f32 %v325, %v320
    %v329 = vmul.f32 %v325, %v319
    %v330 = vmul.f32 %v325, %v318
    %v331 = vmul.f32 %v325, %v317
    %v332 = vmul.f32 %v325, %v322
    %v333 = vadd.f32 %v298, %v327
    %v334 = vadd.f32 %v299, %v328
    %v335 = vadd.f32 %v300, %v329
    %v336 = vadd.f32 %v301, %v330
    %v337 = vadd.f32 %v302, %v331
    %v338 = vadd.f32 %v303, %v332
    %339 = vrot.lane.b32.xlu0 %v141, 111
    %v340 = vpop.permute.xlu0 %339
    %341 = vrot.lane.b32.xlu0 %v142, 111
    %v342 = vpop.permute.xlu0 %341
    %343 = vrot.lane.b32.xlu0 %v143, 111
    %v344 = vpop.permute.xlu0 %343
    %345 = vrot.lane.b32.xlu0 %v144, 111
    %v346 = vpop.permute.xlu0 %345
    %347 = vrot.lane.b32.xlu0 %v145, 111
    %v348 = vpop.permute.xlu0 %347
    %349 = vrot.lane.b32.xlu0 %v146, 111
    %v350 = vpop.permute.xlu0 %349
    %vm351 = vcmp.lt.s32.totalorder %v175, 111
    %v352 = vsel %vm351, %v348, %v350
    %v353 = vsel %vm351, %v346, %v348
    %v354 = vsel %vm351, %v344, %v346
    %v355 = vsel %vm351, %v342, %v344
    %v356 = vsel %vm351, %v340, %v342
    %v357 = vsel %vm351, %v350, %v340
    %358 = vset.pattern.permute.xlu0 6
    %359 = vperm.xlu0 %358, %v150
    %v360 = vpop.permute.xlu0 %359
    %v362 = vmul.f32 %v360, %v356
    %v363 = vmul.f32 %v360, %v355
    %v364 = vmul.f32 %v360, %v354
    %v365 = vmul.f32 %v360, %v353
    %v366 = vmul.f32 %v360, %v352
    %v367 = vmul.f32 %v360, %v357
    %v368 = vadd.f32 %v333, %v362
    %v369 = vadd.f32 %v334, %v363
    %v370 = vadd.f32 %v335, %v364
    %v371 = vadd.f32 %v336, %v365
    %v372 = vadd.f32 %v337, %v366
    %v373 = vadd.f32 %v338, %v367
    %374 = vrot.lane.b32.xlu0 %v141, 110
    %v375 = vpop.permute.xlu0 %374
    %376 = vrot.lane.b32.xlu0 %v142, 110
    %v377 = vpop.permute.xlu0 %376
    %378 = vrot.lane.b32.xlu0 %v143, 110
    %v379 = vpop.permute.xlu0 %378
    %380 = vrot.lane.b32.xlu0 %v144, 110
    %v381 = vpop.permute.xlu0 %380
    %382 = vrot.lane.b32.xlu0 %v145, 110
    %v383 = vpop.permute.xlu0 %382
    %384 = vrot.lane.b32.xlu0 %v146, 110
    %v385 = vpop.permute.xlu0 %384
    %vm386 = vcmp.lt.s32.totalorder %v175, 110
    %v387 = vsel %vm386, %v383, %v385
    %v388 = vsel %vm386, %v381, %v383
    %v389 = vsel %vm386, %v379, %v381
    %v390 = vsel %vm386, %v377, %v379
    %v391 = vsel %vm386, %v375, %v377
    %v392 = vsel %vm386, %v385, %v375
    %393 = vset.pattern.permute.xlu0 7
    %394 = vperm.xlu0 %393, %v150
    %v395 = vpop.permute.xlu0 %394
    %v397 = vmul.f32 %v395, %v391
    %v398 = vmul.f32 %v395, %v390
    %v399 = vmul.f32 %v395, %v389
    %v400 = vmul.f32 %v395, %v388
    %v401 = vmul.f32 %v395, %v387
    %v402 = vmul.f32 %v395, %v392
    %v403 = vadd.f32 %v368, %v397
    %v404 = vadd.f32 %v369, %v398
    %v405 = vadd.f32 %v370, %v399
    %v406 = vadd.f32 %v371, %v400
    %v407 = vadd.f32 %v372, %v401
    %v408 = vadd.f32 %v373, %v402
    %409 = vrot.lane.b32.xlu0 %v141, 109
    %v410 = vpop.permute.xlu0 %409
    %411 = vrot.lane.b32.xlu0 %v142, 109
    %v412 = vpop.permute.xlu0 %411
    %413 = vrot.lane.b32.xlu0 %v143, 109
    %v414 = vpop.permute.xlu0 %413
    %415 = vrot.lane.b32.xlu0 %v144, 109
    %v416 = vpop.permute.xlu0 %415
    %417 = vrot.lane.b32.xlu0 %v145, 109
    %v418 = vpop.permute.xlu0 %417
    %419 = vrot.lane.b32.xlu0 %v146, 109
    %v420 = vpop.permute.xlu0 %419
    %vm421 = vcmp.lt.s32.totalorder %v175, 109
    %v422 = vsel %vm421, %v418, %v420
    %v423 = vsel %vm421, %v416, %v418
    %v424 = vsel %vm421, %v414, %v416
    %v425 = vsel %vm421, %v412, %v414
    %v426 = vsel %vm421, %v410, %v412
    %v427 = vsel %vm421, %v420, %v410
    %428 = vset.pattern.permute.xlu0 8
    %429 = vperm.xlu0 %428, %v150
    %v430 = vpop.permute.xlu0 %429
    %v432 = vmul.f32 %v430, %v426
    %v433 = vmul.f32 %v430, %v425
    %v434 = vmul.f32 %v430, %v424
    %v435 = vmul.f32 %v430, %v423
    %v436 = vmul.f32 %v430, %v422
    %v437 = vmul.f32 %v430, %v427
    %v438 = vadd.f32 %v403, %v432
    %v439 = vadd.f32 %v404, %v433
    %v440 = vadd.f32 %v405, %v434
    %v441 = vadd.f32 %v406, %v435
    %v442 = vadd.f32 %v407, %v436
    %v443 = vadd.f32 %v408, %v437
    %vm444 = vcmp.gt.f32.partialorder %v438, 0.0
    %vm445 = vcmp.gt.f32.partialorder %v439, 0.0
    %vm446 = vcmp.gt.f32.partialorder %v440, 0.0
    %vm447 = vcmp.gt.f32.partialorder %v441, 0.0
    %vm448 = vcmp.gt.f32.partialorder %v442, 0.0
    %vm449 = vcmp.gt.f32.partialorder %v443, 0.0
    %v450 = vmul.f32 %v438, 0.2
    %v451 = vmul.f32 %v439, 0.2
    %v452 = vmul.f32 %v440, 0.2
    %v453 = vmul.f32 %v441, 0.2
    %v454 = vmul.f32 %v442, 0.2
    %v455 = vmul.f32 %v443, 0.2
    %v456 = vsel %vm444, %v438, %v450
    %v457 = vsel %vm445, %v439, %v451
    %v458 = vsel %vm446, %v440, %v452
    %v459 = vsel %vm447, %v441, %v453
    %v460 = vsel %vm448, %v442, %v454
    %v461 = vsel %vm449, %v443, %v455
    %v462 = vld [vmem:[#allocation8] sm:$0xf]
    %v463 = vpack.c.bf16 %v456, %v456
    %v464 = vpack.c.bf16 %v457, %v457
    %v465 = vpack.c.bf16 %v458, %v458
    %v466 = vpack.c.bf16 %v459, %v459
    %v467 = vpack.c.bf16 %v460, %v460
    %v468 = vpack.c.bf16 %v461, %v461
    %vm469 = vcmask 64512
    %v471 = vsel %vm469, %v462, 0
    %vm473 = vcmask 1043456
    %v475 = vsel %vm473, %v463, 0
    %v478 = vsel %vm473, %v464, 0
    %v481 = vsel %vm473, %v465, 0
    %v484 = vsel %vm473, %v466, 0
    %v487 = vsel %vm473, %v467, 0
    %v490 = vsel %vm473, %v468, 0
    %492 = vmatprep.subr.bf16.mxu0 %v478
    %493 = vmatpush1.bf16.msra.mxu0 %v475
    %494 = vmatprep.subr.bf16.mxu0 0
    %495 = vmatpush1.bf16.msra.mxu0 0
    %496 = vmatprep.subr.bf16.mxu0 0
    %497 = vmatpush1.bf16.msra.mxu0 0
    %498 = vmatprep.subr.bf16.mxu0 0
    %499 = vmatpush1.bf16.msra.mxu0 0
    %500 = vmatprep.subr.bf16.mxu0 0
    %501 = vmatpush1.bf16.msra.mxu0 0
    %502 = vmatprep.subr.bf16.mxu0 0
    %503 = vmatpush1.bf16.msra.mxu0 0
    %504 = vmatprep.subr.bf16.mxu0 0
    %505 = vmatpush1.bf16.msra.mxu0 0
    %506 = vmatprep.subr.bf16.mxu0 0
    %507 = vmatpush1.bf16.msra.mxu0 0
    %508 = vmatprep.subr.bf16.mxu0 0
    %509 = vmatpush1.bf16.msra.mxu0 0
    %510 = vmatprep.subr.bf16.mxu0 0
    %511 = vmatpush1.bf16.msra.mxu0 0
    %512 = vmatprep.subr.bf16.mxu0 0
    %513 = vmatpush1.bf16.msra.mxu0 0
    %514 = vmatprep.subr.bf16.mxu0 0
    %515 = vmatpush1.bf16.msra.mxu0 0
    %516 = vmatprep.subr.bf16.mxu0 0
    %517 = vmatpush1.bf16.msra.mxu0 0
    %518 = vmatprep.subr.bf16.mxu0 0
    %519 = vmatpush1.bf16.msra.mxu0 0
    %520 = vmatprep.subr.bf16.mxu0 0
    %521 = vmatpush1.bf16.msra.mxu0 0
    %522 = vmatprep.subr.bf16.mxu0 0
    %523 = vmatpush1.bf16.msra.mxu0 0
    %524 = vmatprep.mubr.bf16.mxu0 0
    %525 = vmatmul.mubr.bf16.gmra.mrb[0].mxu0 %v471
    %v526 = vpop.f32.mrb[0].mxu0
    %v527 = vadd.f32 0.0, %v526
    %v528 = vpop.f32.mrb[0].mxu0
    %v529 = vadd.f32 0.0, %v528
    %v530 = vpop.f32.mrb[0].mxu0
    %v531 = vpop.f32.mrb[0].mxu0
    %532 = vdwg.mxu0
    %533 = vmatprep.subr.bf16.mxu0 %v484
    %534 = vmatpush1.bf16.msra.mxu0 %v481
    %535 = vmatprep.subr.bf16.mxu0 0
    %536 = vmatpush1.bf16.msra.mxu0 0
    %537 = vmatprep.subr.bf16.mxu0 0
    %538 = vmatpush1.bf16.msra.mxu0 0
    %539 = vmatprep.subr.bf16.mxu0 0
    %540 = vmatpush1.bf16.msra.mxu0 0
    %541 = vmatprep.subr.bf16.mxu0 0
    %542 = vmatpush1.bf16.msra.mxu0 0
    %543 = vmatprep.subr.bf16.mxu0 0
    %544 = vmatpush1.bf16.msra.mxu0 0
    %545 = vmatprep.subr.bf16.mxu0 0
    %546 = vmatpush1.bf16.msra.mxu0 0
    %547 = vmatprep.subr.bf16.mxu0 0
    %548 = vmatpush1.bf16.msra.mxu0 0
    %549 = vmatprep.subr.bf16.mxu0 0
    %550 = vmatpush1.bf16.msra.mxu0 0
    %551 = vmatprep.subr.bf16.mxu0 0
    %552 = vmatpush1.bf16.msra.mxu0 0
    %553 = vmatprep.subr.bf16.mxu0 0
    %554 = vmatpush1.bf16.msra.mxu0 0
    %555 = vmatprep.subr.bf16.mxu0 0
    %556 = vmatpush1.bf16.msra.mxu0 0
    %557 = vmatprep.subr.bf16.mxu0 0
    %558 = vmatpush1.bf16.msra.mxu0 0
    %559 = vmatprep.subr.bf16.mxu0 0
    %560 = vmatpush1.bf16.msra.mxu0 0
    %561 = vmatprep.subr.bf16.mxu0 0
    %562 = vmatpush1.bf16.msra.mxu0 0
    %563 = vmatprep.subr.bf16.mxu0 0
    %564 = vmatpush1.bf16.msra.mxu0 0
    %565 = vmatprep.mubr.bf16.mxu0 0
    %566 = vmatmul.mubr.bf16.gmra.mrb[0].mxu0 %v471
    %v567 = vpop.f32.mrb[0].mxu0
    %v568 = vadd.f32 0.0, %v567
    %v569 = vpop.f32.mrb[0].mxu0
    %v570 = vadd.f32 0.0, %v569
    %v571 = vpop.f32.mrb[0].mxu0
    %v572 = vpop.f32.mrb[0].mxu0
    %573 = vdwg.mxu0
    %574 = vmatprep.subr.bf16.mxu0 %v490
    %575 = vmatpush1.bf16.msra.mxu0 %v487
    %576 = vmatprep.subr.bf16.mxu0 0
    %577 = vmatpush1.bf16.msra.mxu0 0
    %578 = vmatprep.subr.bf16.mxu0 0
    %579 = vmatpush1.bf16.msra.mxu0 0
    %580 = vmatprep.subr.bf16.mxu0 0
    %581 = vmatpush1.bf16.msra.mxu0 0
    %582 = vmatprep.subr.bf16.mxu0 0
    %583 = vmatpush1.bf16.msra.mxu0 0
    %584 = vmatprep.subr.bf16.mxu0 0
    %585 = vmatpush1.bf16.msra.mxu0 0
    %586 = vmatprep.subr.bf16.mxu0 0
    %587 = vmatpush1.bf16.msra.mxu0 0
    %588 = vmatprep.subr.bf16.mxu0 0
    %589 = vmatpush1.bf16.msra.mxu0 0
    %590 = vmatprep.subr.bf16.mxu0 0
    %591 = vmatpush1.bf16.msra.mxu0 0
    %592 = vmatprep.subr.bf16.mxu0 0
    %593 = vmatpush1.bf16.msra.mxu0 0
    %594 = vmatprep.subr.bf16.mxu0 0
    %595 = vmatpush1.bf16.msra.mxu0 0
    %596 = vmatprep.subr.bf16.mxu0 0
    %597 = vmatpush1.bf16.msra.mxu0 0
    %598 = vmatprep.subr.bf16.mxu0 0
    %599 = vmatpush1.bf16.msra.mxu0 0
    %600 = vmatprep.subr.bf16.mxu0 0
    %601 = vmatpush1.bf16.msra.mxu0 0
    %602 = vmatprep.subr.bf16.mxu0 0
    %603 = vmatpush1.bf16.msra.mxu0 0
    %604 = vmatprep.subr.bf16.mxu0 0
    %605 = vmatpush1.bf16.msra.mxu0 0
    %606 = vmatprep.mubr.bf16.mxu0 0
    %607 = vmatmul.mubr.bf16.gmra.mrb[0].mxu0 %v471
    %v608 = vpop.f32.mrb[0].mxu0
    %v609 = vadd.f32 0.0, %v608
    %v610 = vpop.f32.mrb[0].mxu0
    %v611 = vadd.f32 0.0, %v610
    %v612 = vpop.f32.mrb[0].mxu0
    %v613 = vpop.f32.mrb[0].mxu0
    %614 = vdwg.mxu0
    %v615 = vld [vmem:[#allocation10] sm:$0xf]
    %v619 = vunpack.c.l.b16 %v138
    %v620 = vunpack.c.h.b16 %v138
    %v621 = vunpack.c.l.b16 %v139
    %v622 = vunpack.c.h.b16 %v139
    %v623 = vunpack.c.l.b16 %v140
    %v624 = vunpack.c.h.b16 %v140
    %v625 = vpack.c.b16 %v619, %v619
    %v626 = vpack.c.b16 %v620, %v620
    %v627 = vpack.c.b16 %v621, %v621
    %v628 = vpack.c.b16 %v622, %v622
    %v629 = vpack.c.b16 %v623, %v623
    %v630 = vpack.c.b16 %v624, %v624
    %v632 = vsel %vm469, %v615, 0
    %v635 = vsel %vm473, %v625, 0
    %v638 = vsel %vm473, %v626, 0
    %v641 = vsel %vm473, %v627, 0
    %v644 = vsel %vm473, %v628, 0
    %v647 = vsel %vm473, %v629, 0
    %v650 = vsel %vm473, %v630, 0
    %652 = vmatprep.subr.bf16.mxu0 %v638
    %653 = vmatpush1.bf16.msra.mxu0 %v635
    %654 = vmatprep.subr.bf16.mxu0 0
    %655 = vmatpush1.bf16.msra.mxu0 0
    %656 = vmatprep.subr.bf16.mxu0 0
    %657 = vmatpush1.bf16.msra.mxu0 0
    %658 = vmatprep.subr.bf16.mxu0 0
    %659 = vmatpush1.bf16.msra.mxu0 0
    %660 = vmatprep.subr.bf16.mxu0 0
    %661 = vmatpush1.bf16.msra.mxu0 0
    %662 = vmatprep.subr.bf16.mxu0 0
    %663 = vmatpush1.bf16.msra.mxu0 0
    %664 = vmatprep.subr.bf16.mxu0 0
    %665 = vmatpush1.bf16.msra.mxu0 0
    %666 = vmatprep.subr.bf16.mxu0 0
    %667 = vmatpush1.bf16.msra.mxu0 0
    %668 = vmatprep.subr.bf16.mxu0 0
    %669 = vmatpush1.bf16.msra.mxu0 0
    %670 = vmatprep.subr.bf16.mxu0 0
    %671 = vmatpush1.bf16.msra.mxu0 0
    %672 = vmatprep.subr.bf16.mxu0 0
    %673 = vmatpush1.bf16.msra.mxu0 0
    %674 = vmatprep.subr.bf16.mxu0 0
    %675 = vmatpush1.bf16.msra.mxu0 0
    %676 = vmatprep.subr.bf16.mxu0 0
    %677 = vmatpush1.bf16.msra.mxu0 0
    %678 = vmatprep.subr.bf16.mxu0 0
    %679 = vmatpush1.bf16.msra.mxu0 0
    %680 = vmatprep.subr.bf16.mxu0 0
    %681 = vmatpush1.bf16.msra.mxu0 0
    %682 = vmatprep.subr.bf16.mxu0 0
    %683 = vmatpush1.bf16.msra.mxu0 0
    %684 = vmatprep.mubr.bf16.mxu0 0
    %685 = vmatmul.mubr.bf16.gmra.mrb[0].mxu0 %v632
    %v686 = vpop.f32.mrb[0].mxu0
    %v687 = vadd.f32 0.0, %v686
    %v688 = vpop.f32.mrb[0].mxu0
    %v689 = vadd.f32 0.0, %v688
    %v690 = vpop.f32.mrb[0].mxu0
    %v691 = vpop.f32.mrb[0].mxu0
    %692 = vdwg.mxu0
    %693 = vmatprep.subr.bf16.mxu0 %v644
    %694 = vmatpush1.bf16.msra.mxu0 %v641
    %695 = vmatprep.subr.bf16.mxu0 0
    %696 = vmatpush1.bf16.msra.mxu0 0
    %697 = vmatprep.subr.bf16.mxu0 0
    %698 = vmatpush1.bf16.msra.mxu0 0
    %699 = vmatprep.subr.bf16.mxu0 0
    %700 = vmatpush1.bf16.msra.mxu0 0
    %701 = vmatprep.subr.bf16.mxu0 0
    %702 = vmatpush1.bf16.msra.mxu0 0
    %703 = vmatprep.subr.bf16.mxu0 0
    %704 = vmatpush1.bf16.msra.mxu0 0
    %705 = vmatprep.subr.bf16.mxu0 0
    %706 = vmatpush1.bf16.msra.mxu0 0
    %707 = vmatprep.subr.bf16.mxu0 0
    %708 = vmatpush1.bf16.msra.mxu0 0
    %709 = vmatprep.subr.bf16.mxu0 0
    %710 = vmatpush1.bf16.msra.mxu0 0
    %711 = vmatprep.subr.bf16.mxu0 0
    %712 = vmatpush1.bf16.msra.mxu0 0
    %713 = vmatprep.subr.bf16.mxu0 0
    %714 = vmatpush1.bf16.msra.mxu0 0
    %715 = vmatprep.subr.bf16.mxu0 0
    %716 = vmatpush1.bf16.msra.mxu0 0
    %717 = vmatprep.subr.bf16.mxu0 0
    %718 = vmatpush1.bf16.msra.mxu0 0
    %719 = vmatprep.subr.bf16.mxu0 0
    %720 = vmatpush1.bf16.msra.mxu0 0
    %721 = vmatprep.subr.bf16.mxu0 0
    %722 = vmatpush1.bf16.msra.mxu0 0
    %723 = vmatprep.subr.bf16.mxu0 0
    %724 = vmatpush1.bf16.msra.mxu0 0
    %725 = vmatprep.mubr.bf16.mxu0 0
    %726 = vmatmul.mubr.bf16.gmra.mrb[0].mxu0 %v632
    %v727 = vpop.f32.mrb[0].mxu0
    %v728 = vadd.f32 0.0, %v727
    %v729 = vpop.f32.mrb[0].mxu0
    %v730 = vadd.f32 0.0, %v729
    %v731 = vpop.f32.mrb[0].mxu0
    %v732 = vpop.f32.mrb[0].mxu0
    %733 = vdwg.mxu0
    %734 = vmatprep.subr.bf16.mxu0 %v650
    %735 = vmatpush1.bf16.msra.mxu0 %v647
    %736 = vmatprep.subr.bf16.mxu0 0
    %737 = vmatpush1.bf16.msra.mxu0 0
    %738 = vmatprep.subr.bf16.mxu0 0
    %739 = vmatpush1.bf16.msra.mxu0 0
    %740 = vmatprep.subr.bf16.mxu0 0
    %741 = vmatpush1.bf16.msra.mxu0 0
    %742 = vmatprep.subr.bf16.mxu0 0
    %743 = vmatpush1.bf16.msra.mxu0 0
    %744 = vmatprep.subr.bf16.mxu0 0
    %745 = vmatpush1.bf16.msra.mxu0 0
    %746 = vmatprep.subr.bf16.mxu0 0
    %747 = vmatpush1.bf16.msra.mxu0 0
    %748 = vmatprep.subr.bf16.mxu0 0
    %749 = vmatpush1.bf16.msra.mxu0 0
    %750 = vmatprep.subr.bf16.mxu0 0
    %751 = vmatpush1.bf16.msra.mxu0 0
    %752 = vmatprep.subr.bf16.mxu0 0
    %753 = vmatpush1.bf16.msra.mxu0 0
    %754 = vmatprep.subr.bf16.mxu0 0
    %755 = vmatpush1.bf16.msra.mxu0 0
    %756 = vmatprep.subr.bf16.mxu0 0
    %757 = vmatpush1.bf16.msra.mxu0 0
    %758 = vmatprep.subr.bf16.mxu0 0
    %759 = vmatpush1.bf16.msra.mxu0 0
    %760 = vmatprep.subr.bf16.mxu0 0
    %761 = vmatpush1.bf16.msra.mxu0 0
    %762 = vmatprep.subr.bf16.mxu0 0
    %763 = vmatpush1.bf16.msra.mxu0 0
    %764 = vmatprep.subr.bf16.mxu0 0
    %765 = vmatpush1.bf16.msra.mxu0 0
    %766 = vmatprep.mubr.bf16.mxu0 0
    %767 = vmatmul.mubr.bf16.gmra.mrb[0].mxu0 %v632
    %v768 = vpop.f32.mrb[0].mxu0
    %v769 = vadd.f32 0.0, %v768
    %v770 = vpop.f32.mrb[0].mxu0
    %v771 = vadd.f32 0.0, %v770
    %v772 = vpop.f32.mrb[0].mxu0
    %v773 = vpop.f32.mrb[0].mxu0
    %774 = vdwg.mxu0
    %vm775 = vcmp.gt.f32.partialorder %v687, 0.0
    %vm776 = vcmp.gt.f32.partialorder %v689, 0.0
    %vm777 = vcmp.gt.f32.partialorder %v728, 0.0
    %vm778 = vcmp.gt.f32.partialorder %v730, 0.0
    %vm779 = vcmp.gt.f32.partialorder %v769, 0.0
    %vm780 = vcmp.gt.f32.partialorder %v771, 0.0
    %v781 = vmul.f32 %v687, 0.2
    %v782 = vmul.f32 %v689, 0.2
    %v783 = vmul.f32 %v728, 0.2
    %v784 = vmul.f32 %v730, 0.2
    %v785 = vmul.f32 %v769, 0.2
    %v786 = vmul.f32 %v771, 0.2
    %v787 = vsel %vm775, %v687, %v781
    %v788 = vsel %vm776, %v689, %v782
    %v789 = vsel %vm777, %v728, %v783
    %v790 = vsel %vm778, %v730, %v784
    %v791 = vsel %vm779, %v769, %v785
    %v792 = vsel %vm780, %v771, %v786
    %v793 = vld [vmem:[#allocation13] sm:$0xf]
    %v794 = vld [vmem:[#allocation11] sm:$0xff]
    %796 = vset.pattern.permute.xlu0 4
    %797 = vperm.xlu0 %796, %v794
    %v798 = vpop.permute.xlu0 %797
    %v800 = vmul.f32 %v798, %v787
    %v801 = vmul.f32 %v798, %v788
    %v802 = vmul.f32 %v798, %v789
    %v803 = vmul.f32 %v798, %v790
    %v804 = vmul.f32 %v798, %v791
    %v805 = vmul.f32 %v798, %v792
    %806 = vrot.lane.b32.xlu0 %v787, 19
    %v807 = vpop.permute.xlu0 %806
    %808 = vrot.lane.b32.xlu0 %v788, 19
    %v809 = vpop.permute.xlu0 %808
    %810 = vrot.lane.b32.xlu0 %v789, 19
    %v811 = vpop.permute.xlu0 %810
    %812 = vrot.lane.b32.xlu0 %v790, 19
    %v813 = vpop.permute.xlu0 %812
    %814 = vrot.lane.b32.xlu0 %v791, 19
    %v815 = vpop.permute.xlu0 %814
    %816 = vrot.lane.b32.xlu0 %v792, 19
    %v817 = vpop.permute.xlu0 %816
    %v818 = vsel %vm176, %v815, %v817
    %v819 = vsel %vm176, %v813, %v815
    %v820 = vsel %vm176, %v811, %v813
    %v821 = vsel %vm176, %v809, %v811
    %v822 = vsel %vm176, %v807, %v809
    %v823 = vsel %vm176, %v817, %v807
    %824 = vset.pattern.permute.xlu0 0
    %825 = vperm.xlu0 %824, %v794
    %v826 = vpop.permute.xlu0 %825
    %v828 = vmul.f32 %v826, %v823
    %v829 = vmul.f32 %v826, %v822
    %v830 = vmul.f32 %v826, %v821
    %v831 = vmul.f32 %v826, %v820
    %v832 = vmul.f32 %v826, %v819
    %v833 = vmul.f32 %v826, %v818
    %v834 = vadd.f32 %v800, %v828
    %v835 = vadd.f32 %v801, %v829
    %v836 = vadd.f32 %v802, %v830
    %v837 = vadd.f32 %v803, %v831
    %v838 = vadd.f32 %v804, %v832
    %v839 = vadd.f32 %v805, %v833
    %840 = vrot.lane.b32.xlu0 %v787, 18
    %v841 = vpop.permute.xlu0 %840
    %842 = vrot.lane.b32.xlu0 %v788, 18
    %v843 = vpop.permute.xlu0 %842
    %844 = vrot.lane.b32.xlu0 %v789, 18
    %v845 = vpop.permute.xlu0 %844
    %846 = vrot.lane.b32.xlu0 %v790, 18
    %v847 = vpop.permute.xlu0 %846
    %848 = vrot.lane.b32.xlu0 %v791, 18
    %v849 = vpop.permute.xlu0 %848
    %850 = vrot.lane.b32.xlu0 %v792, 18
    %v851 = vpop.permute.xlu0 %850
    %v852 = vsel %vm211, %v849, %v851
    %v853 = vsel %vm211, %v847, %v849
    %v854 = vsel %vm211, %v845, %v847
    %v855 = vsel %vm211, %v843, %v845
    %v856 = vsel %vm211, %v841, %v843
    %v857 = vsel %vm211, %v851, %v841
    %858 = vset.pattern.permute.xlu0 1
    %859 = vperm.xlu0 %858, %v794
    %v860 = vpop.permute.xlu0 %859
    %v862 = vmul.f32 %v860, %v857
    %v863 = vmul.f32 %v860, %v856
    %v864 = vmul.f32 %v860, %v855
    %v865 = vmul.f32 %v860, %v854
    %v866 = vmul.f32 %v860, %v853
    %v867 = vmul.f32 %v860, %v852
    %v868 = vadd.f32 %v834, %v862
    %v869 = vadd.f32 %v835, %v863
    %v870 = vadd.f32 %v836, %v864
    %v871 = vadd.f32 %v837, %v865
    %v872 = vadd.f32 %v838, %v866
    %v873 = vadd.f32 %v839, %v867
    %874 = vrot.lane.b32.xlu0 %v787, 17
    %v875 = vpop.permute.xlu0 %874
    %876 = vrot.lane.b32.xlu0 %v788, 17
    %v877 = vpop.permute.xlu0 %876
    %878 = vrot.lane.b32.xlu0 %v789, 17
    %v879 = vpop.permute.xlu0 %878
    %880 = vrot.lane.b32.xlu0 %v790, 17
    %v881 = vpop.permute.xlu0 %880
    %882 = vrot.lane.b32.xlu0 %v791, 17
    %v883 = vpop.permute.xlu0 %882
    %884 = vrot.lane.b32.xlu0 %v792, 17
    %v885 = vpop.permute.xlu0 %884
    %v886 = vsel %vm246, %v883, %v885
    %v887 = vsel %vm246, %v881, %v883
    %v888 = vsel %vm246, %v879, %v881
    %v889 = vsel %vm246, %v877, %v879
    %v890 = vsel %vm246, %v875, %v877
    %v891 = vsel %vm246, %v885, %v875
    %892 = vset.pattern.permute.xlu0 2
    %893 = vperm.xlu0 %892, %v794
    %v894 = vpop.permute.xlu0 %893
    %v896 = vmul.f32 %v894, %v891
    %v897 = vmul.f32 %v894, %v890
    %v898 = vmul.f32 %v894, %v889
    %v899 = vmul.f32 %v894, %v888
    %v900 = vmul.f32 %v894, %v887
    %v901 = vmul.f32 %v894, %v886
    %v902 = vadd.f32 %v868, %v896
    %v903 = vadd.f32 %v869, %v897
    %v904 = vadd.f32 %v870, %v898
    %v905 = vadd.f32 %v871, %v899
    %v906 = vadd.f32 %v872, %v900
    %v907 = vadd.f32 %v873, %v901
    %908 = vrot.lane.b32.xlu0 %v787, 1
    %v909 = vpop.permute.xlu0 %908
    %910 = vrot.lane.b32.xlu0 %v788, 1
    %v911 = vpop.permute.xlu0 %910
    %912 = vrot.lane.b32.xlu0 %v789, 1
    %v913 = vpop.permute.xlu0 %912
    %914 = vrot.lane.b32.xlu0 %v790, 1
    %v915 = vpop.permute.xlu0 %914
    %916 = vrot.lane.b32.xlu0 %v791, 1
    %v917 = vpop.permute.xlu0 %916
    %918 = vrot.lane.b32.xlu0 %v792, 1
    %v919 = vpop.permute.xlu0 %918
    %v920 = vsel %vm281, %v917, %v919
    %v921 = vsel %vm281, %v915, %v917
    %v922 = vsel %vm281, %v913, %v915
    %v923 = vsel %vm281, %v911, %v913
    %v924 = vsel %vm281, %v909, %v911
    %v925 = vsel %vm281, %v919, %v909
    %926 = vset.pattern.permute.xlu0 3
    %927 = vperm.xlu0 %926, %v794
    %v928 = vpop.permute.xlu0 %927
    %v930 = vmul.f32 %v928, %v925
    %v931 = vmul.f32 %v928, %v924
    %v932 = vmul.f32 %v928, %v923
    %v933 = vmul.f32 %v928, %v922
    %v934 = vmul.f32 %v928, %v921
    %v935 = vmul.f32 %v928, %v920
    %v936 = vadd.f32 %v902, %v930
    %v937 = vadd.f32 %v903, %v931
    %v938 = vadd.f32 %v904, %v932
    %v939 = vadd.f32 %v905, %v933
    %v940 = vadd.f32 %v906, %v934
    %v941 = vadd.f32 %v907, %v935
    %942 = vrot.lane.b32.xlu0 %v787, 127
    %v943 = vpop.permute.xlu0 %942
    %944 = vrot.lane.b32.xlu0 %v788, 127
    %v945 = vpop.permute.xlu0 %944
    %946 = vrot.lane.b32.xlu0 %v789, 127
    %v947 = vpop.permute.xlu0 %946
    %948 = vrot.lane.b32.xlu0 %v790, 127
    %v949 = vpop.permute.xlu0 %948
    %950 = vrot.lane.b32.xlu0 %v791, 127
    %v951 = vpop.permute.xlu0 %950
    %952 = vrot.lane.b32.xlu0 %v792, 127
    %v953 = vpop.permute.xlu0 %952
    %v954 = vsel %vm316, %v951, %v953
    %v955 = vsel %vm316, %v949, %v951
    %v956 = vsel %vm316, %v947, %v949
    %v957 = vsel %vm316, %v945, %v947
    %v958 = vsel %vm316, %v943, %v945
    %v959 = vsel %vm316, %v953, %v943
    %960 = vset.pattern.permute.xlu0 5
    %961 = vperm.xlu0 %960, %v794
    %v962 = vpop.permute.xlu0 %961
    %v964 = vmul.f32 %v962, %v958
    %v965 = vmul.f32 %v962, %v957
    %v966 = vmul.f32 %v962, %v956
    %v967 = vmul.f32 %v962, %v955
    %v968 = vmul.f32 %v962, %v954
    %v969 = vmul.f32 %v962, %v959
    %v970 = vadd.f32 %v936, %v964
    %v971 = vadd.f32 %v937, %v965
    %v972 = vadd.f32 %v938, %v966
    %v973 = vadd.f32 %v939, %v967
    %v974 = vadd.f32 %v940, %v968
    %v975 = vadd.f32 %v941, %v969
    %976 = vrot.lane.b32.xlu0 %v787, 111
    %v977 = vpop.permute.xlu0 %976
    %978 = vrot.lane.b32.xlu0 %v788, 111
    %v979 = vpop.permute.xlu0 %978
    %980 = vrot.lane.b32.xlu0 %v789, 111
    %v981 = vpop.permute.xlu0 %980
    %982 = vrot.lane.b32.xlu0 %v790, 111
    %v983 = vpop.permute.xlu0 %982
    %984 = vrot.lane.b32.xlu0 %v791, 111
    %v985 = vpop.permute.xlu0 %984
    %986 = vrot.lane.b32.xlu0 %v792, 111
    %v987 = vpop.permute.xlu0 %986
    %v988 = vsel %vm351, %v985, %v987
    %v989 = vsel %vm351, %v983, %v985
    %v990 = vsel %vm351, %v981, %v983
    %v991 = vsel %vm351, %v979, %v981
    %v992 = vsel %vm351, %v977, %v979
    %v993 = vsel %vm351, %v987, %v977
    %994 = vset.pattern.permute.xlu0 6
    %995 = vperm.xlu0 %994, %v794
    %v996 = vpop.permute.xlu0 %995
    %v998 = vmul.f32 %v996, %v992
    %v999 = vmul.f32 %v996, %v991
    %v1000 = vmul.f32 %v996, %v990
    %v1001 = vmul.f32 %v996, %v989
    %v1002 = vmul.f32 %v996, %v988
    %v1003 = vmul.f32 %v996, %v993
    %v1004 = vadd.f32 %v970, %v998
    %v1005 = vadd.f32 %v971, %v999
    %v1006 = vadd.f32 %v972, %v1000
    %v1007 = vadd.f32 %v973, %v1001
    %v1008 = vadd.f32 %v974, %v1002
    %v1009 = vadd.f32 %v975, %v1003
    %1010 = vrot.lane.b32.xlu0 %v787, 110
    %v1011 = vpop.permute.xlu0 %1010
    %1012 = vrot.lane.b32.xlu0 %v788, 110
    %v1013 = vpop.permute.xlu0 %1012
    %1014 = vrot.lane.b32.xlu0 %v789, 110
    %v1015 = vpop.permute.xlu0 %1014
    %1016 = vrot.lane.b32.xlu0 %v790, 110
    %v1017 = vpop.permute.xlu0 %1016
    %1018 = vrot.lane.b32.xlu0 %v791, 110
    %v1019 = vpop.permute.xlu0 %1018
    %1020 = vrot.lane.b32.xlu0 %v792, 110
    %v1021 = vpop.permute.xlu0 %1020
    %v1022 = vsel %vm386, %v1019, %v1021
    %v1023 = vsel %vm386, %v1017, %v1019
    %v1024 = vsel %vm386, %v1015, %v1017
    %v1025 = vsel %vm386, %v1013, %v1015
    %v1026 = vsel %vm386, %v1011, %v1013
    %v1027 = vsel %vm386, %v1021, %v1011
    %1028 = vset.pattern.permute.xlu0 7
    %1029 = vperm.xlu0 %1028, %v794
    %v1030 = vpop.permute.xlu0 %1029
    %v1032 = vmul.f32 %v1030, %v1026
    %v1033 = vmul.f32 %v1030, %v1025
    %v1034 = vmul.f32 %v1030, %v1024
    %v1035 = vmul.f32 %v1030, %v1023
    %v1036 = vmul.f32 %v1030, %v1022
    %v1037 = vmul.f32 %v1030, %v1027
    %v1038 = vadd.f32 %v1004, %v1032
    %v1039 = vadd.f32 %v1005, %v1033
    %v1040 = vadd.f32 %v1006, %v1034
    %v1041 = vadd.f32 %v1007, %v1035
    %v1042 = vadd.f32 %v1008, %v1036
    %v1043 = vadd.f32 %v1009, %v1037
    %1044 = vrot.lane.b32.xlu0 %v787, 109
    %v1045 = vpop.permute.xlu0 %1044
    %1046 = vrot.lane.b32.xlu0 %v788, 109
    %v1047 = vpop.permute.xlu0 %1046
    %1048 = vrot.lane.b32.xlu0 %v789, 109
    %v1049 = vpop.permute.xlu0 %1048
    %1050 = vrot.lane.b32.xlu0 %v790, 109
    %v1051 = vpop.permute.xlu0 %1050
    %1052 = vrot.lane.b32.xlu0 %v791, 109
    %v1053 = vpop.permute.xlu0 %1052
    %1054 = vrot.lane.b32.xlu0 %v792, 109
    %v1055 = vpop.permute.xlu0 %1054
    %v1056 = vsel %vm421, %v1053, %v1055
    %v1057 = vsel %vm421, %v1051, %v1053
    %v1058 = vsel %vm421, %v1049, %v1051
    %v1059 = vsel %vm421, %v1047, %v1049
    %v1060 = vsel %vm421, %v1045, %v1047
    %v1061 = vsel %vm421, %v1055, %v1045
    %1062 = vset.pattern.permute.xlu0 8
    %1063 = vperm.xlu0 %1062, %v794
    %v1064 = vpop.permute.xlu0 %1063
    %v1066 = vmul.f32 %v1064, %v1060
    %v1067 = vmul.f32 %v1064, %v1059
    %v1068 = vmul.f32 %v1064, %v1058
    %v1069 = vmul.f32 %v1064, %v1057
    %v1070 = vmul.f32 %v1064, %v1056
    %v1071 = vmul.f32 %v1064, %v1061
    %v1072 = vadd.f32 %v1038, %v1066
    %v1073 = vadd.f32 %v1039, %v1067
    %v1074 = vadd.f32 %v1040, %v1068
    %v1075 = vadd.f32 %v1041, %v1069
    %v1076 = vadd.f32 %v1042, %v1070
    %v1077 = vadd.f32 %v1043, %v1071
    %v1078 = vpack.c.bf16 %v1072, %v1072
    %v1079 = vpack.c.bf16 %v1073, %v1073
    %v1080 = vpack.c.bf16 %v1074, %v1074
    %v1081 = vpack.c.bf16 %v1075, %v1075
    %v1082 = vpack.c.bf16 %v1076, %v1076
    %v1083 = vpack.c.bf16 %v1077, %v1077
    %v1085 = vsel %vm469, %v793, 0
    %v1088 = vsel %vm473, %v1078, 0
    %v1091 = vsel %vm473, %v1079, 0
    %v1094 = vsel %vm473, %v1080, 0
    %v1097 = vsel %vm473, %v1081, 0
    %v1100 = vsel %vm473, %v1082, 0
    %v1103 = vsel %vm473, %v1083, 0
    %1105 = vmatprep.subr.bf16.mxu0 %v1091
    %1106 = vmatpush1.bf16.msra.mxu0 %v1088
    %1107 = vmatprep.subr.bf16.mxu0 0
    %1108 = vmatpush1.bf16.msra.mxu0 0
    %1109 = vmatprep.subr.bf16.mxu0 0
    %1110 = vmatpush1.bf16.msra.mxu0 0
    %1111 = vmatprep.subr.bf16.mxu0 0
    %1112 = vmatpush1.bf16.msra.mxu0 0
    %1113 = vmatprep.subr.bf16.mxu0 0
    %1114 = vmatpush1.bf16.msra.mxu0 0
    %1115 = vmatprep.subr.bf16.mxu0 0
    %1116 = vmatpush1.bf16.msra.mxu0 0
    %1117 = vmatprep.subr.bf16.mxu0 0
    %1118 = vmatpush1.bf16.msra.mxu0 0
    %1119 = vmatprep.subr.bf16.mxu0 0
    %1120 = vmatpush1.bf16.msra.mxu0 0
    %1121 = vmatprep.subr.bf16.mxu0 0
    %1122 = vmatpush1.bf16.msra.mxu0 0
    %1123 = vmatprep.subr.bf16.mxu0 0
    %1124 = vmatpush1.bf16.msra.mxu0 0
    %1125 = vmatprep.subr.bf16.mxu0 0
    %1126 = vmatpush1.bf16.msra.mxu0 0
    %1127 = vmatprep.subr.bf16.mxu0 0
    %1128 = vmatpush1.bf16.msra.mxu0 0
    %1129 = vmatprep.subr.bf16.mxu0 0
    %1130 = vmatpush1.bf16.msra.mxu0 0
    %1131 = vmatprep.subr.bf16.mxu0 0
    %1132 = vmatpush1.bf16.msra.mxu0 0
    %1133 = vmatprep.subr.bf16.mxu0 0
    %1134 = vmatpush1.bf16.msra.mxu0 0
    %1135 = vmatprep.subr.bf16.mxu0 0
    %1136 = vmatpush1.bf16.msra.mxu0 0
    %1137 = vmatprep.mubr.bf16.mxu0 0
    %1138 = vmatmul.mubr.bf16.gmra.mrb[0].mxu0 %v1085
    %v1139 = vpop.f32.mrb[0].mxu0
    %v1140 = vadd.f32 0.0, %v1139
    %v1141 = vpop.f32.mrb[0].mxu0
    %v1142 = vadd.f32 0.0, %v1141
    %v1143 = vpop.f32.mrb[0].mxu0
    %v1144 = vpop.f32.mrb[0].mxu0
    %1145 = vdwg.mxu0
    %1146 = vmatprep.subr.bf16.mxu0 %v1097
    %1147 = vmatpush1.bf16.msra.mxu0 %v1094
    %1148 = vmatprep.subr.bf16.mxu0 0
    %1149 = vmatpush1.bf16.msra.mxu0 0
    %1150 = vmatprep.subr.bf16.mxu0 0
    %1151 = vmatpush1.bf16.msra.mxu0 0
    %1152 = vmatprep.subr.bf16.mxu0 0
    %1153 = vmatpush1.bf16.msra.mxu0 0
    %1154 = vmatprep.subr.bf16.mxu0 0
    %1155 = vmatpush1.bf16.msra.mxu0 0
    %1156 = vmatprep.subr.bf16.mxu0 0
    %1157 = vmatpush1.bf16.msra.mxu0 0
    %1158 = vmatprep.subr.bf16.mxu0 0
    %1159 = vmatpush1.bf16.msra.mxu0 0
    %1160 = vmatprep.subr.bf16.mxu0 0
    %1161 = vmatpush1.bf16.msra.mxu0 0
    %1162 = vmatprep.subr.bf16.mxu0 0
    %1163 = vmatpush1.bf16.msra.mxu0 0
    %1164 = vmatprep.subr.bf16.mxu0 0
    %1165 = vmatpush1.bf16.msra.mxu0 0
    %1166 = vmatprep.subr.bf16.mxu0 0
    %1167 = vmatpush1.bf16.msra.mxu0 0
    %1168 = vmatprep.subr.bf16.mxu0 0
    %1169 = vmatpush1.bf16.msra.mxu0 0
    %1170 = vmatprep.subr.bf16.mxu0 0
    %1171 = vmatpush1.bf16.msra.mxu0 0
    %1172 = vmatprep.subr.bf16.mxu0 0
    %1173 = vmatpush1.bf16.msra.mxu0 0
    %1174 = vmatprep.subr.bf16.mxu0 0
    %1175 = vmatpush1.bf16.msra.mxu0 0
    %1176 = vmatprep.subr.bf16.mxu0 0
    %1177 = vmatpush1.bf16.msra.mxu0 0
    %1178 = vmatprep.mubr.bf16.mxu0 0
    %1179 = vmatmul.mubr.bf16.gmra.mrb[0].mxu0 %v1085
    %v1180 = vpop.f32.mrb[0].mxu0
    %v1181 = vadd.f32 0.0, %v1180
    %v1182 = vpop.f32.mrb[0].mxu0
    %v1183 = vadd.f32 0.0, %v1182
    %v1184 = vpop.f32.mrb[0].mxu0
    %v1185 = vpop.f32.mrb[0].mxu0
    %1186 = vdwg.mxu0
    %1187 = vmatprep.subr.bf16.mxu0 %v1103
    %1188 = vmatpush1.bf16.msra.mxu0 %v1100
    %1189 = vmatprep.subr.bf16.mxu0 0
    %1190 = vmatpush1.bf16.msra.mxu0 0
    %1191 = vmatprep.subr.bf16.mxu0 0
    %1192 = vmatpush1.bf16.msra.mxu0 0
    %1193 = vmatprep.subr.bf16.mxu0 0
    %1194 = vmatpush1.bf16.msra.mxu0 0
    %1195 = vmatprep.subr.bf16.mxu0 0
    %1196 = vmatpush1.bf16.msra.mxu0 0
    %1197 = vmatprep.subr.bf16.mxu0 0
    %1198 = vmatpush1.bf16.msra.mxu0 0
    %1199 = vmatprep.subr.bf16.mxu0 0
    %1200 = vmatpush1.bf16.msra.mxu0 0
    %1201 = vmatprep.subr.bf16.mxu0 0
    %1202 = vmatpush1.bf16.msra.mxu0 0
    %1203 = vmatprep.subr.bf16.mxu0 0
    %1204 = vmatpush1.bf16.msra.mxu0 0
    %1205 = vmatprep.subr.bf16.mxu0 0
    %1206 = vmatpush1.bf16.msra.mxu0 0
    %1207 = vmatprep.subr.bf16.mxu0 0
    %1208 = vmatpush1.bf16.msra.mxu0 0
    %1209 = vmatprep.subr.bf16.mxu0 0
    %1210 = vmatpush1.bf16.msra.mxu0 0
    %1211 = vmatprep.subr.bf16.mxu0 0
    %1212 = vmatpush1.bf16.msra.mxu0 0
    %1213 = vmatprep.subr.bf16.mxu0 0
    %1214 = vmatpush1.bf16.msra.mxu0 0
    %1215 = vmatprep.subr.bf16.mxu0 0
    %1216 = vmatpush1.bf16.msra.mxu0 0
    %1217 = vmatprep.subr.bf16.mxu0 0
    %1218 = vmatpush1.bf16.msra.mxu0 0
    %1219 = vmatprep.mubr.bf16.mxu0 0
    %1220 = vmatmul.mubr.bf16.gmra.mrb[0].mxu0 %v1085
    %v1221 = vpop.f32.mrb[0].mxu0
    %v1222 = vadd.f32 0.0, %v1221
    %v1223 = vpop.f32.mrb[0].mxu0
    %v1224 = vadd.f32 0.0, %v1223
    %v1225 = vpop.f32.mrb[0].mxu0
    %v1226 = vpop.f32.mrb[0].mxu0
    %1227 = vdwg.mxu0
    %v1230 = vlaneseq
    %v1231 = vshrl.u32 %v1230, 7
    %v1232 = vsub.s32 0, %v1231
    %v1233 = vrot.slane %v148, %v1232
    %v1234 = vlaneseq
    %v1235 = vshrl.u32 %v1234, 7
    %v1236 = vsub.s32 2, %v1235
    %v1237 = vrot.slane %v148, %v1236
    %v1238 = vlaneseq
    %v1239 = vshrl.u32 %v1238, 7
    %v1240 = vsub.s32 4, %v1239
    %v1241 = vrot.slane %v148, %v1240
    %v1242 = vlaneseq
    %v1243 = vshrl.u32 %v1242, 7
    %v1244 = vsub.s32 6, %v1243
    %v1245 = vrot.slane %v148, %v1244
    %v1246 = vlaneseq
    %v1247 = vshrl.u32 %v1246, 7
    %v1248 = vsub.s32 0, %v1247
    %v1249 = vrot.slane %v149, %v1248
    %v1250 = vlaneseq
    %v1251 = vshrl.u32 %v1250, 7
    %v1252 = vsub.s32 2, %v1251
    %v1253 = vrot.slane %v149, %v1252
    %v1260 = vlaneseq
    %v1261 = vshrl.u32 %v1260, 7
    %v1262 = vsub.s32 0, %v1261
    %v1263 = vrot.slane %v1233, %v1262
    %v1264 = vlaneseq
    %v1265 = vshrl.u32 %v1264, 7
    %v1266 = vsub.s32 0, %v1265
    %v1267 = vrot.slane %v1237, %v1266
    %v1268 = vlaneseq
    %v1269 = vshrl.u32 %v1268, 7
    %v1270 = vsub.s32 0, %v1269
    %v1271 = vrot.slane %v1241, %v1270
    %v1272 = vlaneseq
    %v1273 = vshrl.u32 %v1272, 7
    %v1274 = vsub.s32 0, %v1273
    %v1275 = vrot.slane %v1245, %v1274
    %v1276 = vlaneseq
    %v1277 = vshrl.u32 %v1276, 7
    %v1278 = vsub.s32 0, %v1277
    %v1279 = vrot.slane %v1249, %v1278
    %v1280 = vlaneseq
    %v1281 = vshrl.u32 %v1280, 7
    %v1282 = vsub.s32 0, %v1281
    %v1283 = vrot.slane %v1253, %v1282
    %v1284 = vmul.f32 %v1263, %v527
    %v1285 = vmul.f32 %v1267, %v529
    %v1286 = vmul.f32 %v1271, %v568
    %v1287 = vmul.f32 %v1275, %v570
    %v1288 = vmul.f32 %v1279, %v609
    %v1289 = vmul.f32 %v1283, %v611
    %v1290 = vsub.f32 1.0, %v148
    %v1291 = vsub.f32 1.0, %v149
    %v1294 = vlaneseq
    %v1295 = vshrl.u32 %v1294, 7
    %v1296 = vsub.s32 0, %v1295
    %v1297 = vrot.slane %v1290, %v1296
    %v1298 = vlaneseq
    %v1299 = vshrl.u32 %v1298, 7
    %v1300 = vsub.s32 2, %v1299
    %v1301 = vrot.slane %v1290, %v1300
    %v1302 = vlaneseq
    %v1303 = vshrl.u32 %v1302, 7
    %v1304 = vsub.s32 4, %v1303
    %v1305 = vrot.slane %v1290, %v1304
    %v1306 = vlaneseq
    %v1307 = vshrl.u32 %v1306, 7
    %v1308 = vsub.s32 6, %v1307
    %v1309 = vrot.slane %v1290, %v1308
    %v1310 = vlaneseq
    %v1311 = vshrl.u32 %v1310, 7
    %v1312 = vsub.s32 0, %v1311
    %v1313 = vrot.slane %v1291, %v1312
    %v1314 = vlaneseq
    %v1315 = vshrl.u32 %v1314, 7
    %v1316 = vsub.s32 2, %v1315
    %v1317 = vrot.slane %v1291, %v1316
    %v1324 = vlaneseq
    %v1325 = vshrl.u32 %v1324, 7
    %v1326 = vsub.s32 0, %v1325
    %v1327 = vrot.slane %v1297, %v1326
    %v1328 = vlaneseq
    %v1329 = vshrl.u32 %v1328, 7
    %v1330 = vsub.s32 0, %v1329
    %v1331 = vrot.slane %v1301, %v1330
    %v1332 = vlaneseq
    %v1333 = vshrl.u32 %v1332, 7
    %v1334 = vsub.s32 0, %v1333
    %v1335 = vrot.slane %v1305, %v1334
    %v1336 = vlaneseq
    %v1337 = vshrl.u32 %v1336, 7
    %v1338 = vsub.s32 0, %v1337
    %v1339 = vrot.slane %v1309, %v1338
    %v1340 = vlaneseq
    %v1341 = vshrl.u32 %v1340, 7
    %v1342 = vsub.s32 0, %v1341
    %v1343 = vrot.slane %v1313, %v1342
    %v1344 = vlaneseq
    %v1345 = vshrl.u32 %v1344, 7
    %v1346 = vsub.s32 0, %v1345
    %v1347 = vrot.slane %v1317, %v1346
    %v1348 = vmul.f32 %v1327, %v1140
    %v1349 = vmul.f32 %v1331, %v1142
    %v1350 = vmul.f32 %v1335, %v1181
    %v1351 = vmul.f32 %v1339, %v1183
    %v1352 = vmul.f32 %v1343, %v1222
    %v1353 = vmul.f32 %v1347, %v1224
    %v1354 = vadd.f32 %v1284, %v1348
    %v1355 = vadd.f32 %v1285, %v1349
    %v1356 = vadd.f32 %v1286, %v1350
    %v1357 = vadd.f32 %v1287, %v1351
    %v1358 = vadd.f32 %v1288, %v1352
    %v1359 = vadd.f32 %v1289, %v1353
    %v1360 = vld [vmem:[#allocation14] sm:$0xff]
    %v1361 = vld [vmem:[#allocation16] sm:$0xff]
    %v1362 = vrot.slane %v1354, 4
    %v1363 = vadd.f32 %v1354, %v1362
    %v1364 = vrot.slane %v1363, 2
    %v1365 = vadd.f32 %v1363, %v1364
    %v1366 = vrot.slane %v1365, 1
    %v1367 = vadd.f32 %v1365, %v1366
    %v1368 = vrot.slane %v1355, 4
    %v1369 = vadd.f32 %v1355, %v1368
    %v1370 = vrot.slane %v1369, 2
    %v1371 = vadd.f32 %v1369, %v1370
    %v1372 = vrot.slane %v1371, 1
    %v1373 = vadd.f32 %v1371, %v1372
    %v1374 = vrot.slane %v1356, 4
    %v1375 = vadd.f32 %v1356, %v1374
    %v1376 = vrot.slane %v1375, 2
    %v1377 = vadd.f32 %v1375, %v1376
    %v1378 = vrot.slane %v1377, 1
    %v1379 = vadd.f32 %v1377, %v1378
    %v1380 = vrot.slane %v1357, 4
    %v1381 = vadd.f32 %v1357, %v1380
    %v1382 = vrot.slane %v1381, 2
    %v1383 = vadd.f32 %v1381, %v1382
    %v1384 = vrot.slane %v1383, 1
    %v1385 = vadd.f32 %v1383, %v1384
    %v1386 = vrot.slane %v1358, 4
    %v1387 = vadd.f32 %v1358, %v1386
    %v1388 = vrot.slane %v1387, 2
    %v1389 = vadd.f32 %v1387, %v1388
    %v1390 = vrot.slane %v1389, 1
    %v1391 = vadd.f32 %v1389, %v1390
    %v1392 = vrot.slane %v1359, 4
    %v1393 = vadd.f32 %v1359, %v1392
    %v1394 = vrot.slane %v1393, 2
    %v1395 = vadd.f32 %v1393, %v1394
    %v1396 = vrot.slane %v1395, 1
    %v1397 = vadd.f32 %v1395, %v1396
    %v1398 = vrcp.pop 8.0
    %v1399 = vmul.f32 %v1367, %v1398
    %v1400 = vmul.f32 %v1373, %v1398
    %v1401 = vmul.f32 %v1379, %v1398
    %v1402 = vmul.f32 %v1385, %v1398
    %v1403 = vmul.f32 %v1391, %v1398
    %v1404 = vmul.f32 %v1397, %v1398
    %v1405 = vsub.f32 %v1354, %v1399
    %v1406 = vsub.f32 %v1355, %v1400
    %v1407 = vsub.f32 %v1356, %v1401
    %v1408 = vsub.f32 %v1357, %v1402
    %v1409 = vsub.f32 %v1358, %v1403
    %v1410 = vsub.f32 %v1359, %v1404
    %v1411 = vmul.f32 %v1405, %v1405
    %v1412 = vmul.f32 %v1406, %v1406
    %v1413 = vmul.f32 %v1407, %v1407
    %v1414 = vmul.f32 %v1408, %v1408
    %v1415 = vmul.f32 %v1409, %v1409
    %v1416 = vmul.f32 %v1410, %v1410
    %v1417 = vrot.slane %v1411, 4
    %v1418 = vadd.f32 %v1411, %v1417
    %v1419 = vrot.slane %v1418, 2
    %v1420 = vadd.f32 %v1418, %v1419
    %v1421 = vrot.slane %v1420, 1
    %v1422 = vadd.f32 %v1420, %v1421
    %v1423 = vrot.slane %v1412, 4
    %v1424 = vadd.f32 %v1412, %v1423
    %v1425 = vrot.slane %v1424, 2
    %v1426 = vadd.f32 %v1424, %v1425
    %v1427 = vrot.slane %v1426, 1
    %v1428 = vadd.f32 %v1426, %v1427
    %v1429 = vrot.slane %v1413, 4
    %v1430 = vadd.f32 %v1413, %v1429
    %v1431 = vrot.slane %v1430, 2
    %v1432 = vadd.f32 %v1430, %v1431
    %v1433 = vrot.slane %v1432, 1
    %v1434 = vadd.f32 %v1432, %v1433
    %v1435 = vrot.slane %v1414, 4
    %v1436 = vadd.f32 %v1414, %v1435
    %v1437 = vrot.slane %v1436, 2
    %v1438 = vadd.f32 %v1436, %v1437
    %v1439 = vrot.slane %v1438, 1
    %v1440 = vadd.f32 %v1438, %v1439
    %v1441 = vrot.slane %v1415, 4
    %v1442 = vadd.f32 %v1415, %v1441
    %v1443 = vrot.slane %v1442, 2
    %v1444 = vadd.f32 %v1442, %v1443
    %v1445 = vrot.slane %v1444, 1
    %v1446 = vadd.f32 %v1444, %v1445
    %v1447 = vrot.slane %v1416, 4
    %v1448 = vadd.f32 %v1416, %v1447
    %v1449 = vrot.slane %v1448, 2
    %v1450 = vadd.f32 %v1448, %v1449
    %v1451 = vrot.slane %v1450, 1
    %v1452 = vadd.f32 %v1450, %v1451
    %v1453 = vmul.f32 %v1422, %v1398
    %v1454 = vmul.f32 %v1428, %v1398
    %v1455 = vmul.f32 %v1434, %v1398
    %v1456 = vmul.f32 %v1440, %v1398
    %v1457 = vmul.f32 %v1446, %v1398
    %v1458 = vmul.f32 %v1452, %v1398
    %v1459 = vadd.f32 %v1453, 1e-05
    %v1460 = vadd.f32 %v1454, 1e-05
    %v1461 = vadd.f32 %v1455, 1e-05
    %v1462 = vadd.f32 %v1456, 1e-05
    %v1463 = vadd.f32 %v1457, 1e-05
    %v1464 = vadd.f32 %v1458, 1e-05
    %v1465 = vrsqrt.pop %v1459
    %v1466 = vrsqrt.pop %v1460
    %v1467 = vrsqrt.pop %v1461
    %v1468 = vrsqrt.pop %v1462
    %v1469 = vrsqrt.pop %v1463
    %v1470 = vrsqrt.pop %v1464
    %v1471 = vmul.f32 %v1405, %v1465
    %v1472 = vmul.f32 %v1406, %v1466
    %v1473 = vmul.f32 %v1407, %v1467
    %v1474 = vmul.f32 %v1408, %v1468
    %v1475 = vmul.f32 %v1409, %v1469
    %v1476 = vmul.f32 %v1410, %v1470
    %1478 = vset.pattern.permute.xlu0 0
    %1479 = vperm.xlu0 %1478, %v1360
    %v1480 = vpop.permute.xlu0 %1479
    %v1482 = vmul.f32 %v1471, %v1480
    %v1483 = vmul.f32 %v1472, %v1480
    %v1484 = vmul.f32 %v1473, %v1480
    %v1485 = vmul.f32 %v1474, %v1480
    %v1486 = vmul.f32 %v1475, %v1480
    %v1487 = vmul.f32 %v1476, %v1480
    %1489 = vset.pattern.permute.xlu0 0
    %1490 = vperm.xlu0 %1489, %v1361
    %v1491 = vpop.permute.xlu0 %1490
    %v1493 = vadd.f32 %v1482, %v1491
    %v1494 = vadd.f32 %v1483, %v1491
    %v1495 = vadd.f32 %v1484, %v1491
    %v1496 = vadd.f32 %v1485, %v1491
    %v1497 = vadd.f32 %v1486, %v1491
    %v1498 = vadd.f32 %v1487, %v1491
    %v1499 = vpack.c.bf16 %v1493, %v1493
    %v1500 = vpack.c.bf16 %v1494, %v1494
    %v1501 = vpack.c.bf16 %v1495, %v1495
    %v1502 = vpack.c.bf16 %v1496, %v1496
    %v1503 = vpack.c.bf16 %v1497, %v1497
    %v1504 = vpack.c.bf16 %v1498, %v1498
    %v1511 = vunpack.c.l.b16 %v1499
    %v1512 = vunpack.c.l.b16 %v1500
    %v1513 = vunpack.c.l.b16 %v1501
    %v1514 = vunpack.c.l.b16 %v1502
    %v1515 = vunpack.c.l.b16 %v1503
    %v1516 = vunpack.c.l.b16 %v1504
    %v1517 = vpack.c.b16 %v1512, %v1511
    %v1518 = vpack.c.b16 %v1514, %v1513
    %v1519 = vpack.c.b16 %v1516, %v1515
    %1523 = vst [vmem:[#allocation17] sm:$0xff] %v1517
    %1524 = vst [vmem:[#allocation17 + $0x8] sm:$0xff] %v1518
    %1525 = vst [vmem:[#allocation17 + $0x10] sm:$0xff] %v1519
    // Predicated region
    $region74: #{tpu_custom_call.1} parent=1 // pred_check
      _
    $region75: #{tpu_custom_call.1} parent=1 // pred_check_branch
      %1527 = sbr.rel (0) target = $region77
    $region76: #{tpu_custom_call.1} parent=1 // pred_region
      %s1529 = ssub.s32 384, 384
      %1530 = vsyncadd [#allocation4], %s1529
      %s1532 = sshll.u32 [#allocation17], 4
      %s1533 = int_to_ptr.vmem [resolvable:$true] %s1532
      %1535 = dma.vmem_to_hbm [thread:$0]  %s1533, 384, %s9, [#allocation4]
    $region77: #{tpu_custom_call.1} parent=1 // pred_fallthru
      _
    // Predicated region
    $region78: #{tpu_custom_call.1} parent=1 // pred_check
      _
    $region79: #{tpu_custom_call.1} parent=1 // pred_check_branch
      %1537 = sbr.rel (0) target = $region81
    $region80: #{tpu_custom_call.1} parent=1 // pred_region
      %1538 = dma.done [#allocation4], 384
    $region81: #{tpu_custom_call.1} parent=1 // pred_fallthru
      _
    %1539 = vsyncpa [#allocation3], 1
    %1540 = vsyncpa [#allocation6], 1
    %1541 = vsyncpa [#allocation9], 1
    %1542 = vsyncpa [#allocation12], 1
    %1543 = vsyncpa [#allocation15], 1
    %1544 = vsyncpa [#allocation4], 1

</llo_original>
